<compile_context>
chip_gen: v7x
topology: tpu7x:2x2x1
jax: 0.10.0
libtpu: 0.0.40
codegen_flags: <defaults>
</compile_context>

<pallas_src>
import math
import functools

import numpy as np
import jax
import jax.numpy as jnp
from jax import lax
from jax.experimental import pallas as pl
from jax.experimental.pallas import tpu as pltpu


def _round_up(x, m):
    return (x + m - 1) // m * m


def derived_sizes(len_input):
    ho = len_input - 2                           # conv2d 'valid' height (width 4 -> 2)
    hp = ho // 2                                 # maxpool2d(2)  (width pools 2 -> 1)
    k2 = 3 + math.ceil((len_input - 12) / 3)     # conv1d kernel size
    pool2 = 2 + math.ceil((len_input - 12) / 7)  # maxpool1d size
    lout = hp - k2 + 1                           # conv1d 'valid' length
    lfin = lout // pool2                         # maxpool1d output length (floor)
    dims = 32 * lfin                             # flattened feature size (input_dims)
    assert hp >= 1 and k2 >= 1 and lout >= 1 and lfin >= 1, "len_input too small"
    return ho, hp, k2, pool2, lout, lfin, dims


# -----------------------------------------------------------------------------------
# Kernel: one TILE_B-sample batch tile per grid step.
# -----------------------------------------------------------------------------------
def net_forward_kernel(x_ref, w1_ref, b1_ref, w2_ref, b2_ref, wft_ref, bf_ref,
                       out_ref, *, pool2, g1, g2tot, dims):
    # In-kernel f32 -> bf16 cast of the input tile (no separate HBM cast pass).
    x = x_ref[...].astype(jnp.bfloat16)                                   # (TB, H*4)

    # conv2d(1->16,3x3) + maxpool2d(2): one matmul, then max over the 4 pool taps
    # (each tap is a 128-aligned lane group of width g1).  Cast to bf16 before the
    # max/bias/relu to halve the live footprint of the (TB, 4*g1) intermediate.
    y = jnp.dot(x, w1_ref[...], preferred_element_type=jnp.float32)       # (TB, 4*g1)
    y = y.astype(jnp.bfloat16)
    z = jnp.maximum(jnp.maximum(y[:, 0:g1],          y[:, g1:2 * g1]),
                    jnp.maximum(y[:, 2 * g1:3 * g1], y[:, 3 * g1:4 * g1]))
    z = jnp.maximum(z + b1_ref[...], 0.0)                                 # (TB, g1) bf16

    # conv1d(16->32,k2): one matmul into a PACKED layout — pool offset p occupies
    # lanes [p*dims, p*dims + dims) (single 128-lane tile for len_input=16 instead of
    # pool2 separate 128-lane groups).
    o = jnp.dot(z, w2_ref[...], preferred_element_type=jnp.float32)       # (TB, g2tot)
    o = jnp.maximum(o + b2_ref[...], 0.0)

    # maxpool1d(pool2): align pool offset p onto offset 0 with an XLU roll, then VPU max.
    # Lanes >= dims of `pooled` hold wrapped junk; they are zeroed out by wft below.
    pooled = o
    for p in range(1, pool2):
        pooled = jnp.maximum(pooled, pltpu.roll(o, shift=g2tot - p * dims, axis=1))

    # fc1 -> fc2 -> fc3 folded into one (dims, 2) affine, executed OFF the MXU:
    # per-class VPU multiply + XLU cross-lane sum (MXU is the binding unit here).
    wft = wft_ref[...]                                                    # (2, g2tot) f32
    o0 = jnp.sum(pooled * wft[0:1, :], axis=-1, keepdims=True)            # (TB, 1)
    o1 = jnp.sum(pooled * wft[1:2, :], axis=-1, keepdims=True)            # (TB, 1)
    out_ref[...] = jnp.concatenate([o0, o1], axis=-1) + bf_ref[...]       # (TB, 2) f32


# -----------------------------------------------------------------------------------
# Host-side (one-time) fusion of the PyTorch parameters into matmul-friendly weights.
# -----------------------------------------------------------------------------------
def build_fused_params(params, len_input):
    _, hp, k2, pool2, _, lfin, dims = derived_sizes(len_input)
    H = len_input
    g1 = _round_up(hp * 16, 128)           # lane-group width per conv1 pool tap
    g2tot = _round_up(pool2 * dims, 128)   # packed conv2 output width (all pool offsets)
    w1, b1, w2, b2, fw1, fb1, fw2, fb2, fw3, fb3 = [np.asarray(p, np.float32)
                                                    for p in params]

    # conv2d(1->16,3x3)+maxpool2d(2) as X(H*4) @ W1(H*4, 4*g1); tap k occupies lanes
    # [k*g1 + r*16 + c] (pooled row r, channel c).  The im2col is absorbed here.
    W1 = np.zeros((H * 4, 4 * g1), np.float32)
    for k, (ph, pw) in enumerate([(0, 0), (0, 1), (1, 0), (1, 1)]):
        for r in range(hp):
            for di in range(3):
                for dj in range(3):
                    row = (2 * r + ph + di) * 4 + (pw + dj)
                    W1[row, k * g1 + r * 16: k * g1 + (r + 1) * 16] = w1[:, 0, di, dj]
    B1 = np.zeros((1, g1), np.float32)
    for r in range(hp):
        B1[0, r * 16:(r + 1) * 16] = b1

    # conv1d(16->32,k2) as Z(g1) @ W2(g1, g2tot), PACKED: pool offset p occupies lanes
    # [p*dims + tt*32 + ch] (pooled position tt, channel ch); conv positions beyond
    # lfin*pool2 are dropped, matching MaxPool1d's floor/'VALID' behaviour.
    W2 = np.zeros((g1, g2tot), np.float32)
    B2 = np.zeros((1, g2tot), np.float32)
    for p in range(pool2):
        for tt in range(lfin):
            t = tt * pool2 + p
            col = p * dims + tt * 32
            for k in range(k2):
                W2[(t + k) * 16:(t + k + 1) * 16, col:col + 32] = w2[:, :, k].T
            B2[0, col:col + 32] = b2

    # fc1 -> fc2 -> fc3 are affine with no activation in between -> fold to (dims, 2),
    # stored TRANSPOSED, (2, g2tot), for the VPU/XLU final projection.  Rows reordered
    # from PyTorch's channel-major flatten (ch*lfin + tt) to the kernel's position-major
    # lanes (tt*32 + ch); lanes >= dims stay zero (kills the roll-wrap junk).
    Wf = fw1.T @ fw2.T @ fw3.T                                   # (dims, 2)
    bfv = fb1 @ fw2.T @ fw3.T + fb2 @ fw3.T + fb3                # (2,)
    WFT = np.zeros((2, g2tot), np.float32)
    for ch in range(32):
        for tt in range(lfin):
            WFT[:, tt * 32 + ch] = Wf[ch * lfin + tt, :]
    BF = bfv.reshape(1, 2)

    return dict(
        w1=jnp.asarray(W1, jnp.bfloat16), b1=jnp.asarray(B1, jnp.bfloat16),
        w2=jnp.asarray(W2, jnp.bfloat16), b2=jnp.asarray(B2, jnp.float32),
        wft=jnp.asarray(WFT, jnp.float32), bf=jnp.asarray(BF, jnp.float32),
        g1=g1, g2tot=g2tot, pool2=pool2, dims=dims)


def _pick_tile_b(n):
    # Large batch tiles amortize the ~0.35us/step fixed cost and the per-step MXU
    # weight-tile reloads; VMEM stays far below the limit even at TB=1024.
    tile = 1024
    # Keep at least 2 grid steps when the batch allows it so the "parallel" grid axis
    # can shard across v7x's two TensorCores (no-op on single-TC v5e/v6e).
    while tile > 128 and -(-n // tile) < 2:
        tile //= 2
    tile = min(tile, _round_up(n, 8))
    return max(8, tile)


def net_forward(x, fused):
    # x: (N, 1, len_input, 4) float32, NCHW exactly as the PyTorch module expects.
    n, c, h, w = x.shape
    assert c == 1 and w == 4
    h4 = h * 4
    tile_b = _pick_tile_b(n)
    n_pad = _round_up(n, tile_b)

    xf = x.reshape(n, h4)                          # pure reshape, stays f32 (cast in-kernel)
    if n_pad != n:
        xf = jnp.pad(xf, ((0, n_pad - n), (0, 0)))

    g1, g2tot, pool2, dims = fused["g1"], fused["g2tot"], fused["pool2"], fused["dims"]
    kernel = functools.partial(net_forward_kernel, pool2=pool2, g1=g1,
                               g2tot=g2tot, dims=dims)

    out = pl.pallas_call(
        kernel,
        out_shape=jax.ShapeDtypeStruct((n_pad, 2), jnp.float32),
        grid=(n_pad // tile_b,),
        in_specs=[
            pl.BlockSpec((tile_b, h4), lambda i: (i, 0)),
            pl.BlockSpec((h4, 4 * g1), lambda i: (0, 0)),
            pl.BlockSpec((1, g1), lambda i: (0, 0)),
            pl.BlockSpec((g1, g2tot), lambda i: (0, 0)),
            pl.BlockSpec((1, g2tot), lambda i: (0, 0)),
            pl.BlockSpec((2, g2tot), lambda i: (0, 0)),
            pl.BlockSpec((1, 2), lambda i: (0, 0)),
        ],
        out_specs=pl.BlockSpec((tile_b, 2), lambda i: (i, 0)),
        compiler_params=pltpu.CompilerParams(
            dimension_semantics=("parallel",),
            vmem_limit_bytes=32 * 1024 * 1024),
    )(xf, fused["w1"], fused["b1"], fused["w2"], fused["b2"], fused["wft"], fused["bf"])
    return out[:n]


def init_params(key, len_input):
    _, _, k2, _, _, _, dims = derived_sizes(len_input)
    ks = jax.random.split(key, 10)
    s = 0.1
    return (
        s * jax.random.normal(ks[0], (16, 1, 3, 3), jnp.float32),     # conv1.weight
        s * jax.random.normal(ks[1], (16,), jnp.float32),             # conv1.bias
        s * jax.random.normal(ks[2], (32, 16, k2), jnp.float32),      # conv2.weight
        s * jax.random.normal(ks[3], (32,), jnp.float32),             # conv2.bias
        s * jax.random.normal(ks[4], (2 * dims, dims), jnp.float32),  # fc1.weight
        s * jax.random.normal(ks[5], (2 * dims,), jnp.float32),       # fc1.bias
        s * jax.random.normal(ks[6], (dims, 2 * dims), jnp.float32),  # fc2.weight
        s * jax.random.normal(ks[7], (dims,), jnp.float32),           # fc2.bias
        s * jax.random.normal(ks[8], (2, dims), jnp.float32),         # fc3.weight
        s * jax.random.normal(ks[9], (2,), jnp.float32),              # fc3.bias
    )


def reference_forward(x, params):
    # Pure-JAX f32 reference reproducing the PyTorch forward exactly (for validation).
    (w1, b1, w2, b2, fw1, fb1, fw2, fb2, fw3, fb3) = params
    _, _, _, pool2, _, _, _ = derived_sizes(x.shape[2])
    hi = lax.Precision.HIGHEST
    y = lax.conv_general_dilated(x.astype(jnp.float32), w1, (1, 1), 'VALID',
                                 dimension_numbers=('NCHW', 'OIHW', 'NCHW'), precision=hi)
    y = jnp.maximum(y + b1[None, :, None, None], 0.0)
    y = lax.reduce_window(y, -jnp.inf, lax.max, (1, 1, 2, 2), (1, 1, 2, 2), 'VALID')
    y = y[..., 0]                                        # squeeze(3)
    y = lax.conv_general_dilated(y, w2, (1,), 'VALID',
                                 dimension_numbers=('NCH', 'OIH', 'NCH'), precision=hi)
    y = jnp.maximum(y + b2[None, :, None], 0.0)
    y = lax.reduce_window(y, -jnp.inf, lax.max, (1, 1, pool2), (1, 1, pool2), 'VALID')
    flat = y.reshape(y.shape[0], -1)
    h = jnp.dot(flat, fw1.T, precision=hi) + fb1
    h = jnp.dot(h, fw2.T, precision=hi) + fb2
    return jnp.dot(h, fw3.T, precision=hi) + fb3


if __name__ == "__main__":
    # TODO(synk): training loop / optimizer / CrossEntropyLoss / DataLoader / checkpoint
    # I/O of the module are host-side and not part of the forward pass; only forward().
    N, LEN_INPUT = 500, 16            # pads to 2 batch tiles of 256 (>=2 parallel steps)
    key = jax.random.PRNGKey(0)
    kx, kp = jax.random.split(key)
    x = jax.random.normal(kx, (N, 1, LEN_INPUT, 4), jnp.float32)
    params = init_params(kp, LEN_INPUT)

    fused = build_fused_params(params, LEN_INPUT)
    y = jax.block_until_ready(net_forward(x, fused))

    y_ref = reference_forward(x, params)
    # bf16 matmul operands / bf16 conv1 intermediate (f32 accumulation) vs f32 reference.
    np.testing.assert_allclose(np.asarray(y), np.asarray(y_ref), rtol=2e-2, atol=2e-2)
    print("KERNEL_OK")
</pallas_src>

<mosaic_0001>
module attributes {stable_mosaic.version = 11 : i64} {
  func.func @net_forward_kernel(%arg0: i32, %arg1: memref<256x64xf32, #tpu.memory_space<vmem>>, %arg2: memref<64x512xbf16, #tpu.memory_space<vmem>>, %arg3: memref<1x128xbf16, #tpu.memory_space<vmem>>, %arg4: memref<128x128xbf16, #tpu.memory_space<vmem>>, %arg5: memref<1x128xf32, #tpu.memory_space<vmem>>, %arg6: memref<2x128xf32, #tpu.memory_space<vmem>>, %arg7: memref<1x2xf32, #tpu.memory_space<vmem>>, %arg8: memref<256x2xf32, #tpu.memory_space<vmem>>) attributes {dimension_semantics = [#tpu.dimension_semantics<parallel>], iteration_bounds = array<i64: 2>, scalar_prefetch = 0 : i64, scratch_operands = 0 : i64, tpu.core_type = #tpu.core_type<tc>, window_params = [{transform_indices = @transform_0, window_bounds = array<i64: 256, 64>}, {pipeline_mode = #tpu.pipeline_mode<synchronous>, transform_indices = @transform_1, window_bounds = array<i64: 64, 512>}, {pipeline_mode = #tpu.pipeline_mode<synchronous>, transform_indices = @transform_2, window_bounds = array<i64: 1, 128>}, {pipeline_mode = #tpu.pipeline_mode<synchronous>, transform_indices = @transform_3, window_bounds = array<i64: 128, 128>}, {pipeline_mode = #tpu.pipeline_mode<synchronous>, transform_indices = @transform_4, window_bounds = array<i64: 1, 128>}, {pipeline_mode = #tpu.pipeline_mode<synchronous>, transform_indices = @transform_5, window_bounds = array<i64: 2, 128>}, {pipeline_mode = #tpu.pipeline_mode<synchronous>, transform_indices = @transform_6, window_bounds = array<i64: 1, 2>}, {transform_indices = @transform_7, window_bounds = array<i64: 256, 2>}]} {
    %c0 = arith.constant 0 : index
    %c0_0 = arith.constant 0 : index
    %0 = vector.load %arg1[%c0, %c0_0] : memref<256x64xf32, #tpu.memory_space<vmem>>, vector<256x64xf32>
    %1 = arith.truncf %0 : vector<256x64xf32> to vector<256x64xbf16>
    %c0_1 = arith.constant 0 : index
    %c0_2 = arith.constant 0 : index
    %2 = vector.load %arg2[%c0_1, %c0_2] : memref<64x512xbf16, #tpu.memory_space<vmem>>, vector<64x512xbf16>
    %cst = arith.constant dense<0.000000e+00> : vector<256x512xf32>
    %3 = tpu.matmul %1, %2, %cst {dimension_numbers = #tpu.dot_dimension_numbers<[1], [0], [0], [1], [0, 0, 1, 1], [], []>} : vector<256x64xbf16>, vector<64x512xbf16>, vector<256x512xf32> -> vector<256x512xf32>
    %4 = arith.truncf %3 : vector<256x512xf32> to vector<256x512xbf16>
    %5 = vector.extract_strided_slice %4 {offsets = [0, 0], sizes = [256, 128], strides = [1, 1]} : vector<256x512xbf16> to vector<256x128xbf16>
    %6 = vector.extract_strided_slice %4 {offsets = [0, 128], sizes = [256, 128], strides = [1, 1]} : vector<256x512xbf16> to vector<256x128xbf16>
    %7 = arith.maximumf %5, %6 : vector<256x128xbf16>
    %8 = vector.extract_strided_slice %4 {offsets = [0, 256], sizes = [256, 128], strides = [1, 1]} : vector<256x512xbf16> to vector<256x128xbf16>
    %9 = vector.extract_strided_slice %4 {offsets = [0, 384], sizes = [256, 128], strides = [1, 1]} : vector<256x512xbf16> to vector<256x128xbf16>
    %10 = arith.maximumf %8, %9 : vector<256x128xbf16>
    %11 = arith.maximumf %7, %10 : vector<256x128xbf16>
    %c0_3 = arith.constant 0 : index
    %c0_4 = arith.constant 0 : index
    %12 = vector.load %arg3[%c0_3, %c0_4] : memref<1x128xbf16, #tpu.memory_space<vmem>>, vector<1x128xbf16>
    %13 = vector.broadcast %12 : vector<1x128xbf16> to vector<256x128xbf16>
    %14 = arith.addf %11, %13 : vector<256x128xbf16>
    %cst_5 = arith.constant 0.000000e+00 : bf16
    %15 = vector.broadcast %cst_5 : bf16 to vector<256x128xbf16>
    %16 = arith.maximumf %14, %15 : vector<256x128xbf16>
    %c0_6 = arith.constant 0 : index
    %c0_7 = arith.constant 0 : index
    %17 = vector.load %arg4[%c0_6, %c0_7] : memref<128x128xbf16, #tpu.memory_space<vmem>>, vector<128x128xbf16>
    %cst_8 = arith.constant dense<0.000000e+00> : vector<256x128xf32>
    %18 = tpu.matmul %16, %17, %cst_8 {dimension_numbers = #tpu.dot_dimension_numbers<[1], [0], [0], [1], [0, 0, 1, 1], [], []>} : vector<256x128xbf16>, vector<128x128xbf16>, vector<256x128xf32> -> vector<256x128xf32>
    %c0_9 = arith.constant 0 : index
    %c0_10 = arith.constant 0 : index
    %19 = vector.load %arg5[%c0_9, %c0_10] : memref<1x128xf32, #tpu.memory_space<vmem>>, vector<1x128xf32>
    %20 = vector.broadcast %19 : vector<1x128xf32> to vector<256x128xf32>
    %21 = arith.addf %18, %20 : vector<256x128xf32>
    %cst_11 = arith.constant 0.000000e+00 : f32
    %22 = vector.broadcast %cst_11 : f32 to vector<256x128xf32>
    %23 = arith.maximumf %21, %22 : vector<256x128xf32>
    %c96_i32 = arith.constant 96 : i32
    %24 = tpu.dynamic_rotate %23 by %c96_i32 dim 1 : vector<256x128xf32>, i32 -> vector<256x128xf32>
    %25 = arith.maximumf %23, %24 : vector<256x128xf32>
    %c64_i32 = arith.constant 64 : i32
    %26 = tpu.dynamic_rotate %23 by %c64_i32 dim 1 : vector<256x128xf32>, i32 -> vector<256x128xf32>
    %27 = arith.maximumf %25, %26 : vector<256x128xf32>
    %c0_12 = arith.constant 0 : index
    %c0_13 = arith.constant 0 : index
    %28 = vector.load %arg6[%c0_12, %c0_13] : memref<2x128xf32, #tpu.memory_space<vmem>>, vector<2x128xf32>
    %29 = vector.extract_strided_slice %28 {offsets = [0, 0], sizes = [1, 128], strides = [1, 1]} : vector<2x128xf32> to vector<1x128xf32>
    %30 = vector.broadcast %29 : vector<1x128xf32> to vector<256x128xf32>
    %31 = arith.mulf %27, %30 : vector<256x128xf32>
    %cst_14 = arith.constant dense<0.000000e+00> : vector<256xf32>
    %32 = vector.multi_reduction <add>, %31, %cst_14 [1] : vector<256x128xf32> to vector<256xf32>
    %33 = vector.shape_cast %32 : vector<256xf32> to vector<256x1xf32>
    %34 = vector.extract_strided_slice %28 {offsets = [1, 0], sizes = [1, 128], strides = [1, 1]} : vector<2x128xf32> to vector<1x128xf32>
    %35 = vector.broadcast %34 : vector<1x128xf32> to vector<256x128xf32>
    %36 = arith.mulf %27, %35 : vector<256x128xf32>
    %cst_15 = arith.constant dense<0.000000e+00> : vector<256xf32>
    %37 = vector.multi_reduction <add>, %36, %cst_15 [1] : vector<256x128xf32> to vector<256xf32>
    %38 = vector.shape_cast %37 : vector<256xf32> to vector<256x1xf32>
    %39 = tpu.concatenate %33, %38 in 1 : vector<256x1xf32>, vector<256x1xf32> -> vector<256x2xf32>
    %c0_16 = arith.constant 0 : index
    %c0_17 = arith.constant 0 : index
    %40 = vector.load %arg7[%c0_16, %c0_17] : memref<1x2xf32, #tpu.memory_space<vmem>>, vector<1x2xf32>
    %41 = vector.broadcast %40 : vector<1x2xf32> to vector<256x2xf32>
    %42 = arith.addf %39, %41 : vector<256x2xf32>
    %c0_18 = arith.constant 0 : index
    %c0_19 = arith.constant 0 : index
    %43 = vector.load %arg8[%c0_18, %c0_19] : memref<256x2xf32, #tpu.memory_space<vmem>>, vector<256x2xf32>
    tpu.vector_store %arg8[%c0_18, %c0_19], %42 {strides = array<i32>} : memref<256x2xf32, #tpu.memory_space<vmem>>, vector<256x2xf32>,
    return
  }
  func.func @transform_0(%arg0: i32) -> (i32, i32) {
    %c0_i32 = arith.constant 0 : i32
    %c0_i32_0 = arith.constant 0 : i32
    return %arg0, %c0_i32 : i32, i32
  }
  func.func @transform_1(%arg0: i32) -> (i32, i32) {
    %c0_i32 = arith.constant 0 : i32
    %c0_i32_0 = arith.constant 0 : i32
    %c0_i32_1 = arith.constant 0 : i32
    return %c0_i32, %c0_i32_0 : i32, i32
  }
  func.func @transform_2(%arg0: i32) -> (i32, i32) {
    %c0_i32 = arith.constant 0 : i32
    %c0_i32_0 = arith.constant 0 : i32
    %c0_i32_1 = arith.constant 0 : i32
    return %c0_i32, %c0_i32_0 : i32, i32
  }
  func.func @transform_3(%arg0: i32) -> (i32, i32) {
    %c0_i32 = arith.constant 0 : i32
    %c0_i32_0 = arith.constant 0 : i32
    %c0_i32_1 = arith.constant 0 : i32
    return %c0_i32, %c0_i32_0 : i32, i32
  }
  func.func @transform_4(%arg0: i32) -> (i32, i32) {
    %c0_i32 = arith.constant 0 : i32
    %c0_i32_0 = arith.constant 0 : i32
    %c0_i32_1 = arith.constant 0 : i32
    return %c0_i32, %c0_i32_0 : i32, i32
  }
  func.func @transform_5(%arg0: i32) -> (i32, i32) {
    %c0_i32 = arith.constant 0 : i32
    %c0_i32_0 = arith.constant 0 : i32
    %c0_i32_1 = arith.constant 0 : i32
    return %c0_i32, %c0_i32_0 : i32, i32
  }
  func.func @transform_6(%arg0: i32) -> (i32, i32) {
    %c0_i32 = arith.constant 0 : i32
    %c0_i32_0 = arith.constant 0 : i32
    %c0_i32_1 = arith.constant 0 : i32
    return %c0_i32, %c0_i32_0 : i32, i32
  }
  func.func @transform_7(%arg0: i32) -> (i32, i32) {
    %c0_i32 = arith.constant 0 : i32
    %c0_i32_0 = arith.constant 0 : i32
    return %arg0, %c0_i32 : i32, i32
  }
}

</mosaic_0001>

<llo_original>
// kernel: tpu_custom_call.1
$region0: #{tpu_custom_call.1}
  #allocation0 [shape = 'u32[]', space=smem, size = 0x4, offset = 0x4, fixed_abs, tag = 'smem constant byte address 0x4 - core index']
  #allocation1 [shape = 'u32[144,128]{1,0:T(1,128)}', space=vmem, size = 0x12000, scoped, tag = 'internal scratch']
  %s0 = inlined_call_operand.vmem [shape: f32[512,64], index: 0, kind: input, shape index: {}]
  %s1 = inlined_call_operand.vmem [shape: bf16[64,512], index: 1, kind: input, shape index: {}]
  %s2 = inlined_call_operand.vmem [shape: bf16[1,128], index: 2, kind: input, shape index: {}]
  %s3 = inlined_call_operand.vmem [shape: bf16[128,128], index: 3, kind: input, shape index: {}]
  %s4 = inlined_call_operand.vmem [shape: f32[1,128], index: 4, kind: input, shape index: {}]
  %s5 = inlined_call_operand.vmem [shape: f32[2,128], index: 5, kind: input, shape index: {}]
  %s6 = inlined_call_operand.vmem [shape: f32[1,2], index: 6, kind: input, shape index: {}]
  %s7 = inlined_call_operand.vmem [shape: f32[512,2], index: 7, kind: output, shape index: {}]
  %s8 = sld [smem:[#allocation0]]
  $region61: #{tpu_custom_call.1} parent=0
    _
  %s10 = ssub.s32 1, %s8
  %s11 = scalar_select 0, %s10, %s8
  loop: start=0, step=1, limit=4
  $region2: #{tpu_custom_call.1} parent=0 // loop_pre_header
    _
  $region3: #{tpu_custom_call.1} parent=0 // loop_header
    %s13 = sphi 0, %s17
    %p14 = scmp.ge.s32.totalorder %s13, 4
    %s23 = sphi 0, %s25
    %s26 = sphi 0, %s23
    %s27 = sphi 0, %s26
    %s43 = sphi 0, %s27
    %s47 = sphi 0, %s47
    %s49 = sphi 0, %s47
    %s50 = sphi 0, %s49
    %s64 = sphi 0, %s50
    %s68 = sphi 0, %s68
    %s70 = sphi 0, %s68
    %s71 = sphi 0, %s70
    %s85 = sphi 0, %s71
    %s89 = sphi 0, %s89
    %s91 = sphi 0, %s89
    %s92 = sphi 0, %s91
    %s106 = sphi 0, %s92
    %s110 = sphi 0, %s110
    %s112 = sphi 0, %s110
    %s113 = sphi 0, %s112
    %s127 = sphi 0, %s113
    %s131 = sphi 0, %s131
    %s133 = sphi 0, %s131
    %s134 = sphi 0, %s133
    %s148 = sphi 0, %s134
    %s152 = sphi 0, %s152
    %s154 = sphi 0, %s152
    %s155 = sphi 0, %s154
    %s169 = sphi 0, %s155
    %s175 = sphi 0, %s177
    %s178 = sphi 0, %s175
    %s179 = sphi 0, %s178
    %s195 = sphi 0, %s179
  $region4: #{tpu_custom_call.1} parent=0 // loop_header_branch
    %16 = sbr.rel (%p14) target = $region8
  $region5: #{tpu_custom_call.1} parent=0 // loop_body
    %s18 = ssub.s32 %s13, 1
    %s19 = ssub.s32 %s13, 2
    %s20 = sadd.s32 %s13, 1
    %s21 = ssub.s32 %s13, %s20
    %p22 = scmp.eq.s32.totalorder %s21, 0
    %s24 = sadd.s32 %s23, 1
    %s25 = scalar_select %p22, %s23, %s24
    %p28 = pneg %p22
    %p29 = scmp.eq.s32.totalorder %s13, 1
    %p30 = por %p28, %p29
    %p31 = scmp.ne.s32.totalorder %s23, %s26
    %p32 = scmp.eq.s32.totalorder %s13, 0
    %p33 = por %p31, %p32
    %p34 = scmp.ne.s32.totalorder %s23, %s26
    %p35 = scmp.eq.s32.totalorder %s18, 1
    %p36 = por %p34, %p35
    %p37 = scmp.ne.s32.totalorder %s26, %s27
    %p38 = scmp.eq.s32.totalorder %s18, 0
    %p39 = por %p37, %p38
    %p40 = scmp.ne.s32.totalorder %s26, %s27
    %p41 = scmp.eq.s32.totalorder %s19, 1
    %p42 = por %p40, %p41
    %p44 = scmp.ne.s32.totalorder %s27, %s43
    %p45 = scmp.eq.s32.totalorder %s19, 0
    %p46 = por %p44, %p45
    %s48 = sadd.s32 %s47, 1
    %p51 = scmp.eq.s32.totalorder %s13, 1
    %p52 = scmp.ne.s32.totalorder %s47, %s49
    %p53 = scmp.eq.s32.totalorder %s13, 0
    %p54 = por %p52, %p53
    %p55 = scmp.ne.s32.totalorder %s47, %s49
    %p56 = scmp.eq.s32.totalorder %s18, 1
    %p57 = por %p55, %p56
    %p58 = scmp.ne.s32.totalorder %s49, %s50
    %p59 = scmp.eq.s32.totalorder %s18, 0
    %p60 = por %p58, %p59
    %p61 = scmp.ne.s32.totalorder %s49, %s50
    %p62 = scmp.eq.s32.totalorder %s19, 1
    %p63 = por %p61, %p62
    %p65 = scmp.ne.s32.totalorder %s50, %s64
    %p66 = scmp.eq.s32.totalorder %s19, 0
    %p67 = por %p65, %p66
    %s69 = sadd.s32 %s68, 1
    %p72 = scmp.eq.s32.totalorder %s13, 1
    %p73 = scmp.ne.s32.totalorder %s68, %s70
    %p74 = scmp.eq.s32.totalorder %s13, 0
    %p75 = por %p73, %p74
    %p76 = scmp.ne.s32.totalorder %s68, %s70
    %p77 = scmp.eq.s32.totalorder %s18, 1
    %p78 = por %p76, %p77
    %p79 = scmp.ne.s32.totalorder %s70, %s71
    %p80 = scmp.eq.s32.totalorder %s18, 0
    %p81 = por %p79, %p80
    %p82 = scmp.ne.s32.totalorder %s70, %s71
    %p83 = scmp.eq.s32.totalorder %s19, 1
    %p84 = por %p82, %p83
    %p86 = scmp.ne.s32.totalorder %s71, %s85
    %p87 = scmp.eq.s32.totalorder %s19, 0
    %p88 = por %p86, %p87
    %s90 = sadd.s32 %s89, 1
    %p93 = scmp.eq.s32.totalorder %s13, 1
    %p94 = scmp.ne.s32.totalorder %s89, %s91
    %p95 = scmp.eq.s32.totalorder %s13, 0
    %p96 = por %p94, %p95
    %p97 = scmp.ne.s32.totalorder %s89, %s91
    %p98 = scmp.eq.s32.totalorder %s18, 1
    %p99 = por %p97, %p98
    %p100 = scmp.ne.s32.totalorder %s91, %s92
    %p101 = scmp.eq.s32.totalorder %s18, 0
    %p102 = por %p100, %p101
    %p103 = scmp.ne.s32.totalorder %s91, %s92
    %p104 = scmp.eq.s32.totalorder %s19, 1
    %p105 = por %p103, %p104
    %p107 = scmp.ne.s32.totalorder %s92, %s106
    %p108 = scmp.eq.s32.totalorder %s19, 0
    %p109 = por %p107, %p108
    %s111 = sadd.s32 %s110, 1
    %p114 = scmp.eq.s32.totalorder %s13, 1
    %p115 = scmp.ne.s32.totalorder %s110, %s112
    %p116 = scmp.eq.s32.totalorder %s13, 0
    %p117 = por %p115, %p116
    %p118 = scmp.ne.s32.totalorder %s110, %s112
    %p119 = scmp.eq.s32.totalorder %s18, 1
    %p120 = por %p118, %p119
    %p121 = scmp.ne.s32.totalorder %s112, %s113
    %p122 = scmp.eq.s32.totalorder %s18, 0
    %p123 = por %p121, %p122
    %p124 = scmp.ne.s32.totalorder %s112, %s113
    %p125 = scmp.eq.s32.totalorder %s19, 1
    %p126 = por %p124, %p125
    %p128 = scmp.ne.s32.totalorder %s113, %s127
    %p129 = scmp.eq.s32.totalorder %s19, 0
    %p130 = por %p128, %p129
    %s132 = sadd.s32 %s131, 1
    %p135 = scmp.eq.s32.totalorder %s13, 1
    %p136 = scmp.ne.s32.totalorder %s131, %s133
    %p137 = scmp.eq.s32.totalorder %s13, 0
    %p138 = por %p136, %p137
    %p139 = scmp.ne.s32.totalorder %s131, %s133
    %p140 = scmp.eq.s32.totalorder %s18, 1
    %p141 = por %p139, %p140
    %p142 = scmp.ne.s32.totalorder %s133, %s134
    %p143 = scmp.eq.s32.totalorder %s18, 0
    %p144 = por %p142, %p143
    %p145 = scmp.ne.s32.totalorder %s133, %s134
    %p146 = scmp.eq.s32.totalorder %s19, 1
    %p147 = por %p145, %p146
    %p149 = scmp.ne.s32.totalorder %s134, %s148
    %p150 = scmp.eq.s32.totalorder %s19, 0
    %p151 = por %p149, %p150
    %s153 = sadd.s32 %s152, 1
    %p156 = scmp.eq.s32.totalorder %s13, 1
    %p157 = scmp.ne.s32.totalorder %s152, %s154
    %p158 = scmp.eq.s32.totalorder %s13, 0
    %p159 = por %p157, %p158
    %p160 = scmp.ne.s32.totalorder %s152, %s154
    %p161 = scmp.eq.s32.totalorder %s18, 1
    %p162 = por %p160, %p161
    %p163 = scmp.ne.s32.totalorder %s154, %s155
    %p164 = scmp.eq.s32.totalorder %s18, 0
    %p165 = por %p163, %p164
    %p166 = scmp.ne.s32.totalorder %s154, %s155
    %p167 = scmp.eq.s32.totalorder %s19, 1
    %p168 = por %p166, %p167
    %p170 = scmp.ne.s32.totalorder %s155, %s169
    %p171 = scmp.eq.s32.totalorder %s19, 0
    %p172 = por %p170, %p171
    %s173 = ssub.s32 %s13, %s20
    %p174 = scmp.eq.s32.totalorder %s173, 0
    %s176 = sadd.s32 %s175, 1
    %s177 = scalar_select %p174, %s175, %s176
    %p180 = pneg %p174
    %p181 = scmp.eq.s32.totalorder %s13, 1
    %p182 = por %p180, %p181
    %p183 = scmp.ne.s32.totalorder %s175, %s178
    %p184 = scmp.eq.s32.totalorder %s13, 0
    %p185 = por %p183, %p184
    %p186 = scmp.ne.s32.totalorder %s175, %s178
    %p187 = scmp.eq.s32.totalorder %s18, 1
    %p188 = por %p186, %p187
    %p189 = scmp.ne.s32.totalorder %s178, %s179
    %p190 = scmp.eq.s32.totalorder %s18, 0
    %p191 = por %p189, %p190
    %p192 = scmp.ne.s32.totalorder %s178, %s179
    %p193 = scmp.eq.s32.totalorder %s19, 1
    %p194 = por %p192, %p193
    %p196 = scmp.ne.s32.totalorder %s179, %s195
    %p197 = scmp.eq.s32.totalorder %s19, 0
    %p198 = por %p196, %p197
    %p199 = scmp.le.s32.totalorder 1, %s13
    %p200 = scmp.lt.s32.totalorder %s13, 3
    %p201 = pnand %p199, %p200
    %p202 = pneg %p201
    // Predicated region
    $region9: #{tpu_custom_call.1} parent=5 // pred_check
      _
    $region10: #{tpu_custom_call.1} parent=5 // pred_check_branch
      %204 = sbr.rel (%p201) target = $region12
    $region11: #{tpu_custom_call.1} parent=5 // pred_region
      %s205 = ssub.s32 %s13, 1
      // Predicated region
      $region13: #{tpu_custom_call.1} parent=11 // pred_check
        %p206 = pneg %p60
      $region14: #{tpu_custom_call.1} parent=11 // pred_check_branch
        %208 = sbr.rel (%p206) target = $region16
      $region15: #{tpu_custom_call.1} parent=11 // pred_region
        _
      $region16: #{tpu_custom_call.1} parent=11 // pred_fallthru
        _
      // Predicated region
      $region17: #{tpu_custom_call.1} parent=11 // pred_check
        %p209 = pneg %p81
      $region18: #{tpu_custom_call.1} parent=11 // pred_check_branch
        %211 = sbr.rel (%p209) target = $region20
      $region19: #{tpu_custom_call.1} parent=11 // pred_region
        _
      $region20: #{tpu_custom_call.1} parent=11 // pred_fallthru
        _
      // Predicated region
      $region21: #{tpu_custom_call.1} parent=11 // pred_check
        %p212 = pneg %p102
      $region22: #{tpu_custom_call.1} parent=11 // pred_check_branch
        %214 = sbr.rel (%p212) target = $region24
      $region23: #{tpu_custom_call.1} parent=11 // pred_region
        _
      $region24: #{tpu_custom_call.1} parent=11 // pred_fallthru
        _
      // Predicated region
      $region25: #{tpu_custom_call.1} parent=11 // pred_check
        %p215 = pneg %p123
      $region26: #{tpu_custom_call.1} parent=11 // pred_check_branch
        %217 = sbr.rel (%p215) target = $region28
      $region27: #{tpu_custom_call.1} parent=11 // pred_region
        _
      $region28: #{tpu_custom_call.1} parent=11 // pred_fallthru
        _
      // Predicated region
      $region29: #{tpu_custom_call.1} parent=11 // pred_check
        %p218 = pneg %p144
      $region30: #{tpu_custom_call.1} parent=11 // pred_check_branch
        %220 = sbr.rel (%p218) target = $region32
      $region31: #{tpu_custom_call.1} parent=11 // pred_region
        _
      $region32: #{tpu_custom_call.1} parent=11 // pred_fallthru
        _
      // Predicated region
      $region33: #{tpu_custom_call.1} parent=11 // pred_check
        %p221 = pneg %p165
      $region34: #{tpu_custom_call.1} parent=11 // pred_check_branch
        %223 = sbr.rel (%p221) target = $region36
      $region35: #{tpu_custom_call.1} parent=11 // pred_region
        _
      $region36: #{tpu_custom_call.1} parent=11 // pred_fallthru
        _
    $region12: #{tpu_custom_call.1} parent=5 // pred_fallthru
      _
    %p224 = scmp.lt.s32.totalorder %s13, 2
    // Predicated region
    $region37: #{tpu_custom_call.1} parent=5 // pred_check
      %p225 = pneg %p224
    $region38: #{tpu_custom_call.1} parent=5 // pred_check_branch
      %227 = sbr.rel (%p225) target = $region40
    $region39: #{tpu_custom_call.1} parent=5 // pred_region
      // Predicated region
      $region41: #{tpu_custom_call.1} parent=39 // pred_check
        %p228 = pneg %p33
      $region42: #{tpu_custom_call.1} parent=39 // pred_check_branch
        %230 = sbr.rel (%p228) target = $region44
      $region43: #{tpu_custom_call.1} parent=39 // pred_region
        %s231 = smul.u32 32, %s13
        %p232 = scmp.lt.s32.totalorder %s231, 63
        %s233 = scalar_select %p232, %s231, 63
        %s234 = smul.addr %s233, 8
        %s235 = scalar_lea.vmem %s0, %s234
        %s236 = smul.u32 32, %s13
      $region44: #{tpu_custom_call.1} parent=39 // pred_fallthru
        _
    $region40: #{tpu_custom_call.1} parent=5 // pred_fallthru
      _
    %p237 = scmp.le.s32.totalorder 1, %s13
    %p238 = scmp.lt.s32.totalorder %s13, 3
    %p239 = pnand %p237, %p238
    %p240 = pneg %p239
    // Predicated region
    $region45: #{tpu_custom_call.1} parent=5 // pred_check
      _
    $region46: #{tpu_custom_call.1} parent=5 // pred_check_branch
      %242 = sbr.rel (%p239) target = $region48
    $region47: #{tpu_custom_call.1} parent=5 // pred_region
      %s243 = ssub.s32 %s13, 1
      %s244 = smul.u32 32, %s18
      %p245 = scmp.lt.s32.totalorder %s244, 63
      %s246 = scalar_select %p245, %s244, 63
      %s247 = smul.addr %s246, 8
      %s248 = scalar_lea.vmem %s0, %s247
      %p249 = pneg %p39
      %p250 = pneg %p36
      %p251 = pneg %p60
      %p252 = pneg %p57
      %p253 = pneg %p81
      %p254 = pneg %p78
      %p255 = pneg %p102
      %p256 = pneg %p99
      %p257 = pneg %p123
      %p258 = pneg %p120
      %p259 = pneg %p144
      %p260 = pneg %p141
      %p261 = pneg %p165
      %p262 = pneg %p162
      %p263 = pneg %p191
      %p264 = pneg %p188
      %s265 = smul.u32 32, %s18
      %p266 = scmp.lt.s32.totalorder %s265, 63
      %s267 = scalar_select %p266, %s265, 63
      %s268 = smul.addr %s267, 8
      %s269 = scalar_lea.vmem %s7, %s268
      %s270 = smul.u32 32, %s18
      %p271 = scmp.lt.s32.totalorder %s270, 63
      %s272 = scalar_select %p271, %s270, 63
      %s273 = smul.addr %s272, 8
      %s274 = scalar_lea.vmem %s0, %s273
      %s275 = smul.u32 32, %s18
      %s276 = smul.u32 32, %s18
      %p277 = scmp.lt.s32.totalorder %s276, 63
      %s278 = scalar_select %p277, %s276, 63
      %s279 = smul.addr %s278, 8
      %s280 = scalar_lea.vmem %s7, %s279
      %s281 = smul.u32 32, %s18
      %v283 = vld [vmem:[%s274] sm:$0xff]
      %v284 = vld [vmem:[%s274 + $0x8] sm:$0xff]
      %v285 = vld [vmem:[%s274 + $0x10] sm:$0xff]
      %v286 = vld [vmem:[%s274 + $0x18] sm:$0xff]
      %v287 = vld [vmem:[%s274 + $0x20] sm:$0xff]
      %v288 = vld [vmem:[%s274 + $0x28] sm:$0xff]
      %v289 = vld [vmem:[%s274 + $0x30] sm:$0xff]
      %v290 = vld [vmem:[%s274 + $0x38] sm:$0xff]
      %v291 = vld [vmem:[%s274 + $0x40] sm:$0xff]
      %v292 = vld [vmem:[%s274 + $0x48] sm:$0xff]
      %v293 = vld [vmem:[%s274 + $0x50] sm:$0xff]
      %v294 = vld [vmem:[%s274 + $0x58] sm:$0xff]
      %v295 = vld [vmem:[%s274 + $0x60] sm:$0xff]
      %v296 = vld [vmem:[%s274 + $0x68] sm:$0xff]
      %v297 = vld [vmem:[%s274 + $0x70] sm:$0xff]
      %v298 = vld [vmem:[%s274 + $0x78] sm:$0xff]
      %v299 = vld [vmem:[%s274 + $0x80] sm:$0xff]
      %v300 = vld [vmem:[%s274 + $0x88] sm:$0xff]
      %v301 = vld [vmem:[%s274 + $0x90] sm:$0xff]
      %v302 = vld [vmem:[%s274 + $0x98] sm:$0xff]
      %v303 = vld [vmem:[%s274 + $0xa0] sm:$0xff]
      %v304 = vld [vmem:[%s274 + $0xa8] sm:$0xff]
      %v305 = vld [vmem:[%s274 + $0xb0] sm:$0xff]
      %v306 = vld [vmem:[%s274 + $0xb8] sm:$0xff]
      %v307 = vld [vmem:[%s274 + $0xc0] sm:$0xff]
      %v308 = vld [vmem:[%s274 + $0xc8] sm:$0xff]
      %v309 = vld [vmem:[%s274 + $0xd0] sm:$0xff]
      %v310 = vld [vmem:[%s274 + $0xd8] sm:$0xff]
      %v311 = vld [vmem:[%s274 + $0xe0] sm:$0xff]
      %v312 = vld [vmem:[%s274 + $0xe8] sm:$0xff]
      %v313 = vld [vmem:[%s274 + $0xf0] sm:$0xff]
      %v314 = vld [vmem:[%s274 + $0xf8] sm:$0xff]
      %v315 = vpack.c.bf16 %v284, %v283
      %v316 = vpack.c.bf16 %v286, %v285
      %v317 = vpack.c.bf16 %v288, %v287
      %v318 = vpack.c.bf16 %v290, %v289
      %v319 = vpack.c.bf16 %v292, %v291
      %v320 = vpack.c.bf16 %v294, %v293
      %v321 = vpack.c.bf16 %v296, %v295
      %v322 = vpack.c.bf16 %v298, %v297
      %v323 = vpack.c.bf16 %v300, %v299
      %v324 = vpack.c.bf16 %v302, %v301
      %v325 = vpack.c.bf16 %v304, %v303
      %v326 = vpack.c.bf16 %v306, %v305
      %v327 = vpack.c.bf16 %v308, %v307
      %v328 = vpack.c.bf16 %v310, %v309
      %v329 = vpack.c.bf16 %v312, %v311
      %v330 = vpack.c.bf16 %v314, %v313
      %v331 = vld [vmem:[%s1] sm:$0xff]
      %v332 = vld [vmem:[%s1 + $0x8] sm:$0xff]
      %v333 = vld [vmem:[%s1 + $0x10] sm:$0xff]
      %v334 = vld [vmem:[%s1 + $0x18] sm:$0xff]
      %v335 = vld [vmem:[%s1 + $0x20] sm:$0xff]
      %v336 = vld [vmem:[%s1 + $0x28] sm:$0xff]
      %v337 = vld [vmem:[%s1 + $0x30] sm:$0xff]
      %v338 = vld [vmem:[%s1 + $0x38] sm:$0xff]
      %v339 = vld [vmem:[%s1 + $0x40] sm:$0xff]
      %v340 = vld [vmem:[%s1 + $0x48] sm:$0xff]
      %v341 = vld [vmem:[%s1 + $0x50] sm:$0xff]
      %v342 = vld [vmem:[%s1 + $0x58] sm:$0xff]
      %v343 = vld [vmem:[%s1 + $0x60] sm:$0xff]
      %v344 = vld [vmem:[%s1 + $0x68] sm:$0xff]
      %v345 = vld [vmem:[%s1 + $0x70] sm:$0xff]
      %v346 = vld [vmem:[%s1 + $0x78] sm:$0xff]
      %v363 = vunpack.c.l.b16 %v331
      %v364 = vunpack.c.h.b16 %v331
      %v365 = vunpack.c.l.b16 %v332
      %v366 = vunpack.c.h.b16 %v332
      %v367 = vunpack.c.l.b16 %v333
      %v368 = vunpack.c.h.b16 %v333
      %v369 = vunpack.c.l.b16 %v334
      %v370 = vunpack.c.h.b16 %v334
      %v371 = vunpack.c.l.b16 %v335
      %v372 = vunpack.c.h.b16 %v335
      %v373 = vunpack.c.l.b16 %v336
      %v374 = vunpack.c.h.b16 %v336
      %v375 = vunpack.c.l.b16 %v337
      %v376 = vunpack.c.h.b16 %v337
      %v377 = vunpack.c.l.b16 %v338
      %v378 = vunpack.c.h.b16 %v338
      %v379 = vunpack.c.l.b16 %v339
      %v380 = vunpack.c.h.b16 %v339
      %v381 = vunpack.c.l.b16 %v340
      %v382 = vunpack.c.h.b16 %v340
      %v383 = vunpack.c.l.b16 %v341
      %v384 = vunpack.c.h.b16 %v341
      %v385 = vunpack.c.l.b16 %v342
      %v386 = vunpack.c.h.b16 %v342
      %v387 = vunpack.c.l.b16 %v343
      %v388 = vunpack.c.h.b16 %v343
      %v389 = vunpack.c.l.b16 %v344
      %v390 = vunpack.c.h.b16 %v344
      %v391 = vunpack.c.l.b16 %v345
      %v392 = vunpack.c.h.b16 %v345
      %v393 = vunpack.c.l.b16 %v346
      %v394 = vunpack.c.h.b16 %v346
      %v395 = vpack.c.b16 %v367, %v363
      %v396 = vpack.c.b16 %v368, %v364
      %v397 = vpack.c.b16 %v369, %v365
      %v398 = vpack.c.b16 %v370, %v366
      %v399 = vpack.c.b16 %v375, %v371
      %v400 = vpack.c.b16 %v376, %v372
      %v401 = vpack.c.b16 %v377, %v373
      %v402 = vpack.c.b16 %v378, %v374
      %v403 = vpack.c.b16 %v383, %v379
      %v404 = vpack.c.b16 %v384, %v380
      %v405 = vpack.c.b16 %v385, %v381
      %v406 = vpack.c.b16 %v386, %v382
      %v407 = vpack.c.b16 %v391, %v387
      %v408 = vpack.c.b16 %v392, %v388
      %v409 = vpack.c.b16 %v393, %v389
      %v410 = vpack.c.b16 %v394, %v390
      %vm427 = vcmask 523264
      %v429 = vsel %vm427, %v315, 0
      %v432 = vsel %vm427, %v316, 0
      %v435 = vsel %vm427, %v317, 0
      %v438 = vsel %vm427, %v318, 0
      %v441 = vsel %vm427, %v319, 0
      %v444 = vsel %vm427, %v320, 0
      %v447 = vsel %vm427, %v321, 0
      %v450 = vsel %vm427, %v322, 0
      %v453 = vsel %vm427, %v323, 0
      %v456 = vsel %vm427, %v324, 0
      %v459 = vsel %vm427, %v325, 0
      %v462 = vsel %vm427, %v326, 0
      %v465 = vsel %vm427, %v327, 0
      %v468 = vsel %vm427, %v328, 0
      %v471 = vsel %vm427, %v329, 0
      %v474 = vsel %vm427, %v330, 0
      %476 = vmatprep.subr.bf16.mxu0 %v396
      %477 = vmatpush1.bf16.msra.mxu0 %v395
      %478 = vmatprep.subr.bf16.mxu0 %v400
      %479 = vmatpush1.bf16.msra.mxu0 %v399
      %480 = vmatprep.subr.bf16.mxu0 %v404
      %481 = vmatpush1.bf16.msra.mxu0 %v403
      %482 = vmatprep.subr.bf16.mxu0 %v408
      %483 = vmatpush1.bf16.msra.mxu0 %v407
      %484 = vmatprep.subr.bf16.mxu0 0
      %485 = vmatpush1.bf16.msra.mxu0 0
      %486 = vmatprep.subr.bf16.mxu0 0
      %487 = vmatpush1.bf16.msra.mxu0 0
      %488 = vmatprep.subr.bf16.mxu0 0
      %489 = vmatpush1.bf16.msra.mxu0 0
      %490 = vmatprep.subr.bf16.mxu0 0
      %491 = vmatpush1.bf16.msra.mxu0 0
      %492 = vmatprep.subr.bf16.mxu0 0
      %493 = vmatpush1.bf16.msra.mxu0 0
      %494 = vmatprep.subr.bf16.mxu0 0
      %495 = vmatpush1.bf16.msra.mxu0 0
      %496 = vmatprep.subr.bf16.mxu0 0
      %497 = vmatpush1.bf16.msra.mxu0 0
      %498 = vmatprep.subr.bf16.mxu0 0
      %499 = vmatpush1.bf16.msra.mxu0 0
      %500 = vmatprep.subr.bf16.mxu0 0
      %501 = vmatpush1.bf16.msra.mxu0 0
      %502 = vmatprep.subr.bf16.mxu0 0
      %503 = vmatpush1.bf16.msra.mxu0 0
      %504 = vmatprep.subr.bf16.mxu0 0
      %505 = vmatpush1.bf16.msra.mxu0 0
      %506 = vmatprep.subr.bf16.mxu0 0
      %507 = vmatpush1.bf16.msra.mxu0 0
      %508 = vmatprep.mubr.bf16.mxu0 0
      %509 = vmatmul.mubr.bf16.gmra.mrb[0].mxu0 %v429
      %v510 = vpop.f32.mrb[0].mxu0
      %v511 = vadd.f32 0.0, %v510
      %v512 = vpop.f32.mrb[0].mxu0
      %v513 = vadd.f32 0.0, %v512
      %v514 = vpop.f32.mrb[0].mxu0
      %v515 = vadd.f32 0.0, %v514
      %v516 = vpop.f32.mrb[0].mxu0
      %v517 = vadd.f32 0.0, %v516
      %518 = vmatprep.mubr.bf16.mxu0 0
      %519 = vmatmul.mubr.bf16.gmra.mrb[0].mxu0 %v432
      %v520 = vpop.f32.mrb[0].mxu0
      %v521 = vadd.f32 0.0, %v520
      %v522 = vpop.f32.mrb[0].mxu0
      %v523 = vadd.f32 0.0, %v522
      %v524 = vpop.f32.mrb[0].mxu0
      %v525 = vadd.f32 0.0, %v524
      %v526 = vpop.f32.mrb[0].mxu0
      %v527 = vadd.f32 0.0, %v526
      %528 = vmatprep.mubr.bf16.mxu0 0
      %529 = vmatmul.mubr.bf16.gmra.mrb[0].mxu0 %v435
      %v530 = vpop.f32.mrb[0].mxu0
      %v531 = vadd.f32 0.0, %v530
      %v532 = vpop.f32.mrb[0].mxu0
      %v533 = vadd.f32 0.0, %v532
      %v534 = vpop.f32.mrb[0].mxu0
      %v535 = vadd.f32 0.0, %v534
      %v536 = vpop.f32.mrb[0].mxu0
      %v537 = vadd.f32 0.0, %v536
      %538 = vmatprep.mubr.bf16.mxu0 0
      %539 = vmatmul.mubr.bf16.gmra.mrb[0].mxu0 %v438
      %v540 = vpop.f32.mrb[0].mxu0
      %v541 = vadd.f32 0.0, %v540
      %v542 = vpop.f32.mrb[0].mxu0
      %v543 = vadd.f32 0.0, %v542
      %v544 = vpop.f32.mrb[0].mxu0
      %v545 = vadd.f32 0.0, %v544
      %v546 = vpop.f32.mrb[0].mxu0
      %v547 = vadd.f32 0.0, %v546
      %548 = vmatprep.mubr.bf16.mxu0 0
      %549 = vmatmul.mubr.bf16.gmra.mrb[0].mxu0 %v441
      %v550 = vpop.f32.mrb[0].mxu0
      %v551 = vadd.f32 0.0, %v550
      %v552 = vpop.f32.mrb[0].mxu0
      %v553 = vadd.f32 0.0, %v552
      %v554 = vpop.f32.mrb[0].mxu0
      %v555 = vadd.f32 0.0, %v554
      %v556 = vpop.f32.mrb[0].mxu0
      %v557 = vadd.f32 0.0, %v556
      %558 = vmatprep.mubr.bf16.mxu0 0
      %559 = vmatmul.mubr.bf16.gmra.mrb[0].mxu0 %v444
      %v560 = vpop.f32.mrb[0].mxu0
      %v561 = vadd.f32 0.0, %v560
      %v562 = vpop.f32.mrb[0].mxu0
      %v563 = vadd.f32 0.0, %v562
      %v564 = vpop.f32.mrb[0].mxu0
      %v565 = vadd.f32 0.0, %v564
      %v566 = vpop.f32.mrb[0].mxu0
      %v567 = vadd.f32 0.0, %v566
      %568 = vmatprep.mubr.bf16.mxu0 0
      %569 = vmatmul.mubr.bf16.gmra.mrb[0].mxu0 %v447
      %v570 = vpop.f32.mrb[0].mxu0
      %v571 = vadd.f32 0.0, %v570
      %v572 = vpop.f32.mrb[0].mxu0
      %v573 = vadd.f32 0.0, %v572
      %v574 = vpop.f32.mrb[0].mxu0
      %v575 = vadd.f32 0.0, %v574
      %v576 = vpop.f32.mrb[0].mxu0
      %v577 = vadd.f32 0.0, %v576
      %578 = vmatprep.mubr.bf16.mxu0 0
      %579 = vmatmul.mubr.bf16.gmra.mrb[0].mxu0 %v450
      %v580 = vpop.f32.mrb[0].mxu0
      %v581 = vadd.f32 0.0, %v580
      %v582 = vpop.f32.mrb[0].mxu0
      %v583 = vadd.f32 0.0, %v582
      %v584 = vpop.f32.mrb[0].mxu0
      %v585 = vadd.f32 0.0, %v584
      %v586 = vpop.f32.mrb[0].mxu0
      %v587 = vadd.f32 0.0, %v586
      %588 = vmatprep.mubr.bf16.mxu0 0
      %589 = vmatmul.mubr.bf16.gmra.mrb[0].mxu0 %v453
      %v590 = vpop.f32.mrb[0].mxu0
      %v591 = vadd.f32 0.0, %v590
      %v592 = vpop.f32.mrb[0].mxu0
      %v593 = vadd.f32 0.0, %v592
      %v594 = vpop.f32.mrb[0].mxu0
      %v595 = vadd.f32 0.0, %v594
      %v596 = vpop.f32.mrb[0].mxu0
      %v597 = vadd.f32 0.0, %v596
      %598 = vmatprep.mubr.bf16.mxu0 0
      %599 = vmatmul.mubr.bf16.gmra.mrb[0].mxu0 %v456
      %v600 = vpop.f32.mrb[0].mxu0
      %v601 = vadd.f32 0.0, %v600
      %v602 = vpop.f32.mrb[0].mxu0
      %v603 = vadd.f32 0.0, %v602
      %v604 = vpop.f32.mrb[0].mxu0
      %v605 = vadd.f32 0.0, %v604
      %v606 = vpop.f32.mrb[0].mxu0
      %v607 = vadd.f32 0.0, %v606
      %608 = vmatprep.mubr.bf16.mxu0 0
      %609 = vmatmul.mubr.bf16.gmra.mrb[0].mxu0 %v459
      %v610 = vpop.f32.mrb[0].mxu0
      %v611 = vadd.f32 0.0, %v610
      %v612 = vpop.f32.mrb[0].mxu0
      %v613 = vadd.f32 0.0, %v612
      %v614 = vpop.f32.mrb[0].mxu0
      %v615 = vadd.f32 0.0, %v614
      %v616 = vpop.f32.mrb[0].mxu0
      %v617 = vadd.f32 0.0, %v616
      %618 = vmatprep.mubr.bf16.mxu0 0
      %619 = vmatmul.mubr.bf16.gmra.mrb[0].mxu0 %v462
      %v620 = vpop.f32.mrb[0].mxu0
      %v621 = vadd.f32 0.0, %v620
      %v622 = vpop.f32.mrb[0].mxu0
      %v623 = vadd.f32 0.0, %v622
      %v624 = vpop.f32.mrb[0].mxu0
      %v625 = vadd.f32 0.0, %v624
      %v626 = vpop.f32.mrb[0].mxu0
      %v627 = vadd.f32 0.0, %v626
      %628 = vmatprep.mubr.bf16.mxu0 0
      %629 = vmatmul.mubr.bf16.gmra.mrb[0].mxu0 %v465
      %v630 = vpop.f32.mrb[0].mxu0
      %v631 = vadd.f32 0.0, %v630
      %v632 = vpop.f32.mrb[0].mxu0
      %v633 = vadd.f32 0.0, %v632
      %v634 = vpop.f32.mrb[0].mxu0
      %v635 = vadd.f32 0.0, %v634
      %v636 = vpop.f32.mrb[0].mxu0
      %v637 = vadd.f32 0.0, %v636
      %638 = vmatprep.mubr.bf16.mxu0 0
      %639 = vmatmul.mubr.bf16.gmra.mrb[0].mxu0 %v468
      %v640 = vpop.f32.mrb[0].mxu0
      %v641 = vadd.f32 0.0, %v640
      %v642 = vpop.f32.mrb[0].mxu0
      %v643 = vadd.f32 0.0, %v642
      %v644 = vpop.f32.mrb[0].mxu0
      %v645 = vadd.f32 0.0, %v644
      %v646 = vpop.f32.mrb[0].mxu0
      %v647 = vadd.f32 0.0, %v646
      %648 = vmatprep.mubr.bf16.mxu0 0
      %649 = vmatmul.mubr.bf16.gmra.mrb[0].mxu0 %v471
      %v650 = vpop.f32.mrb[0].mxu0
      %v651 = vadd.f32 0.0, %v650
      %v652 = vpop.f32.mrb[0].mxu0
      %v653 = vadd.f32 0.0, %v652
      %v654 = vpop.f32.mrb[0].mxu0
      %v655 = vadd.f32 0.0, %v654
      %v656 = vpop.f32.mrb[0].mxu0
      %v657 = vadd.f32 0.0, %v656
      %658 = vmatprep.mubr.bf16.mxu0 0
      %659 = vmatmul.mubr.bf16.gmra.mrb[0].mxu0 %v474
      %v660 = vpop.f32.mrb[0].mxu0
      %v661 = vadd.f32 0.0, %v660
      %v662 = vpop.f32.mrb[0].mxu0
      %v663 = vadd.f32 0.0, %v662
      %v664 = vpop.f32.mrb[0].mxu0
      %v665 = vadd.f32 0.0, %v664
      %v666 = vpop.f32.mrb[0].mxu0
      %v667 = vadd.f32 0.0, %v666
      %668 = vdwg.mxu0
      %669 = vmatprep.subr.bf16.mxu0 %v398
      %670 = vmatpush1.bf16.msra.mxu0 %v397
      %671 = vmatprep.subr.bf16.mxu0 %v402
      %672 = vmatpush1.bf16.msra.mxu0 %v401
      %673 = vmatprep.subr.bf16.mxu0 %v406
      %674 = vmatpush1.bf16.msra.mxu0 %v405
      %675 = vmatprep.subr.bf16.mxu0 %v410
      %676 = vmatpush1.bf16.msra.mxu0 %v409
      %677 = vmatprep.subr.bf16.mxu0 0
      %678 = vmatpush1.bf16.msra.mxu0 0
      %679 = vmatprep.subr.bf16.mxu0 0
      %680 = vmatpush1.bf16.msra.mxu0 0
      %681 = vmatprep.subr.bf16.mxu0 0
      %682 = vmatpush1.bf16.msra.mxu0 0
      %683 = vmatprep.subr.bf16.mxu0 0
      %684 = vmatpush1.bf16.msra.mxu0 0
      %685 = vmatprep.subr.bf16.mxu0 0
      %686 = vmatpush1.bf16.msra.mxu0 0
      %687 = vmatprep.subr.bf16.mxu0 0
      %688 = vmatpush1.bf16.msra.mxu0 0
      %689 = vmatprep.subr.bf16.mxu0 0
      %690 = vmatpush1.bf16.msra.mxu0 0
      %691 = vmatprep.subr.bf16.mxu0 0
      %692 = vmatpush1.bf16.msra.mxu0 0
      %693 = vmatprep.subr.bf16.mxu0 0
      %694 = vmatpush1.bf16.msra.mxu0 0
      %695 = vmatprep.subr.bf16.mxu0 0
      %696 = vmatpush1.bf16.msra.mxu0 0
      %697 = vmatprep.subr.bf16.mxu0 0
      %698 = vmatpush1.bf16.msra.mxu0 0
      %699 = vmatprep.subr.bf16.mxu0 0
      %700 = vmatpush1.bf16.msra.mxu0 0
      %701 = vmatprep.mubr.bf16.mxu0 0
      %702 = vmatmul.mubr.bf16.gmra.mrb[0].mxu0 %v429
      %v703 = vpop.f32.mrb[0].mxu0
      %v704 = vadd.f32 0.0, %v703
      %v705 = vpop.f32.mrb[0].mxu0
      %v706 = vadd.f32 0.0, %v705
      %v707 = vpop.f32.mrb[0].mxu0
      %v708 = vadd.f32 0.0, %v707
      %v709 = vpop.f32.mrb[0].mxu0
      %v710 = vadd.f32 0.0, %v709
      %711 = vmatprep.mubr.bf16.mxu0 0
      %712 = vmatmul.mubr.bf16.gmra.mrb[0].mxu0 %v432
      %v713 = vpop.f32.mrb[0].mxu0
      %v714 = vadd.f32 0.0, %v713
      %v715 = vpop.f32.mrb[0].mxu0
      %v716 = vadd.f32 0.0, %v715
      %v717 = vpop.f32.mrb[0].mxu0
      %v718 = vadd.f32 0.0, %v717
      %v719 = vpop.f32.mrb[0].mxu0
      %v720 = vadd.f32 0.0, %v719
      %721 = vmatprep.mubr.bf16.mxu0 0
      %722 = vmatmul.mubr.bf16.gmra.mrb[0].mxu0 %v435
      %v723 = vpop.f32.mrb[0].mxu0
      %v724 = vadd.f32 0.0, %v723
      %v725 = vpop.f32.mrb[0].mxu0
      %v726 = vadd.f32 0.0, %v725
      %v727 = vpop.f32.mrb[0].mxu0
      %v728 = vadd.f32 0.0, %v727
      %v729 = vpop.f32.mrb[0].mxu0
      %v730 = vadd.f32 0.0, %v729
      %731 = vmatprep.mubr.bf16.mxu0 0
      %732 = vmatmul.mubr.bf16.gmra.mrb[0].mxu0 %v438
      %v733 = vpop.f32.mrb[0].mxu0
      %v734 = vadd.f32 0.0, %v733
      %v735 = vpop.f32.mrb[0].mxu0
      %v736 = vadd.f32 0.0, %v735
      %v737 = vpop.f32.mrb[0].mxu0
      %v738 = vadd.f32 0.0, %v737
      %v739 = vpop.f32.mrb[0].mxu0
      %v740 = vadd.f32 0.0, %v739
      %741 = vmatprep.mubr.bf16.mxu0 0
      %742 = vmatmul.mubr.bf16.gmra.mrb[0].mxu0 %v441
      %v743 = vpop.f32.mrb[0].mxu0
      %v744 = vadd.f32 0.0, %v743
      %v745 = vpop.f32.mrb[0].mxu0
      %v746 = vadd.f32 0.0, %v745
      %v747 = vpop.f32.mrb[0].mxu0
      %v748 = vadd.f32 0.0, %v747
      %v749 = vpop.f32.mrb[0].mxu0
      %v750 = vadd.f32 0.0, %v749
      %751 = vmatprep.mubr.bf16.mxu0 0
      %752 = vmatmul.mubr.bf16.gmra.mrb[0].mxu0 %v444
      %v753 = vpop.f32.mrb[0].mxu0
      %v754 = vadd.f32 0.0, %v753
      %v755 = vpop.f32.mrb[0].mxu0
      %v756 = vadd.f32 0.0, %v755
      %v757 = vpop.f32.mrb[0].mxu0
      %v758 = vadd.f32 0.0, %v757
      %v759 = vpop.f32.mrb[0].mxu0
      %v760 = vadd.f32 0.0, %v759
      %761 = vmatprep.mubr.bf16.mxu0 0
      %762 = vmatmul.mubr.bf16.gmra.mrb[0].mxu0 %v447
      %v763 = vpop.f32.mrb[0].mxu0
      %v764 = vadd.f32 0.0, %v763
      %v765 = vpop.f32.mrb[0].mxu0
      %v766 = vadd.f32 0.0, %v765
      %v767 = vpop.f32.mrb[0].mxu0
      %v768 = vadd.f32 0.0, %v767
      %v769 = vpop.f32.mrb[0].mxu0
      %v770 = vadd.f32 0.0, %v769
      %771 = vmatprep.mubr.bf16.mxu0 0
      %772 = vmatmul.mubr.bf16.gmra.mrb[0].mxu0 %v450
      %v773 = vpop.f32.mrb[0].mxu0
      %v774 = vadd.f32 0.0, %v773
      %v775 = vpop.f32.mrb[0].mxu0
      %v776 = vadd.f32 0.0, %v775
      %v777 = vpop.f32.mrb[0].mxu0
      %v778 = vadd.f32 0.0, %v777
      %v779 = vpop.f32.mrb[0].mxu0
      %v780 = vadd.f32 0.0, %v779
      %781 = vmatprep.mubr.bf16.mxu0 0
      %782 = vmatmul.mubr.bf16.gmra.mrb[0].mxu0 %v453
      %v783 = vpop.f32.mrb[0].mxu0
      %v784 = vadd.f32 0.0, %v783
      %v785 = vpop.f32.mrb[0].mxu0
      %v786 = vadd.f32 0.0, %v785
      %v787 = vpop.f32.mrb[0].mxu0
      %v788 = vadd.f32 0.0, %v787
      %v789 = vpop.f32.mrb[0].mxu0
      %v790 = vadd.f32 0.0, %v789
      %791 = vmatprep.mubr.bf16.mxu0 0
      %792 = vmatmul.mubr.bf16.gmra.mrb[0].mxu0 %v456
      %v793 = vpop.f32.mrb[0].mxu0
      %v794 = vadd.f32 0.0, %v793
      %v795 = vpop.f32.mrb[0].mxu0
      %v796 = vadd.f32 0.0, %v795
      %v797 = vpop.f32.mrb[0].mxu0
      %v798 = vadd.f32 0.0, %v797
      %v799 = vpop.f32.mrb[0].mxu0
      %v800 = vadd.f32 0.0, %v799
      %801 = vmatprep.mubr.bf16.mxu0 0
      %802 = vmatmul.mubr.bf16.gmra.mrb[0].mxu0 %v459
      %v803 = vpop.f32.mrb[0].mxu0
      %v804 = vadd.f32 0.0, %v803
      %v805 = vpop.f32.mrb[0].mxu0
      %v806 = vadd.f32 0.0, %v805
      %v807 = vpop.f32.mrb[0].mxu0
      %v808 = vadd.f32 0.0, %v807
      %v809 = vpop.f32.mrb[0].mxu0
      %v810 = vadd.f32 0.0, %v809
      %811 = vmatprep.mubr.bf16.mxu0 0
      %812 = vmatmul.mubr.bf16.gmra.mrb[0].mxu0 %v462
      %v813 = vpop.f32.mrb[0].mxu0
      %v814 = vadd.f32 0.0, %v813
      %v815 = vpop.f32.mrb[0].mxu0
      %v816 = vadd.f32 0.0, %v815
      %v817 = vpop.f32.mrb[0].mxu0
      %v818 = vadd.f32 0.0, %v817
      %v819 = vpop.f32.mrb[0].mxu0
      %v820 = vadd.f32 0.0, %v819
      %821 = vmatprep.mubr.bf16.mxu0 0
      %822 = vmatmul.mubr.bf16.gmra.mrb[0].mxu0 %v465
      %v823 = vpop.f32.mrb[0].mxu0
      %v824 = vadd.f32 0.0, %v823
      %v825 = vpop.f32.mrb[0].mxu0
      %v826 = vadd.f32 0.0, %v825
      %v827 = vpop.f32.mrb[0].mxu0
      %v828 = vadd.f32 0.0, %v827
      %v829 = vpop.f32.mrb[0].mxu0
      %v830 = vadd.f32 0.0, %v829
      %831 = vmatprep.mubr.bf16.mxu0 0
      %832 = vmatmul.mubr.bf16.gmra.mrb[0].mxu0 %v468
      %v833 = vpop.f32.mrb[0].mxu0
      %v834 = vadd.f32 0.0, %v833
      %v835 = vpop.f32.mrb[0].mxu0
      %v836 = vadd.f32 0.0, %v835
      %v837 = vpop.f32.mrb[0].mxu0
      %v838 = vadd.f32 0.0, %v837
      %v839 = vpop.f32.mrb[0].mxu0
      %v840 = vadd.f32 0.0, %v839
      %841 = vmatprep.mubr.bf16.mxu0 0
      %842 = vmatmul.mubr.bf16.gmra.mrb[0].mxu0 %v471
      %v843 = vpop.f32.mrb[0].mxu0
      %v844 = vadd.f32 0.0, %v843
      %v845 = vpop.f32.mrb[0].mxu0
      %v846 = vadd.f32 0.0, %v845
      %v847 = vpop.f32.mrb[0].mxu0
      %v848 = vadd.f32 0.0, %v847
      %v849 = vpop.f32.mrb[0].mxu0
      %v850 = vadd.f32 0.0, %v849
      %851 = vmatprep.mubr.bf16.mxu0 0
      %852 = vmatmul.mubr.bf16.gmra.mrb[0].mxu0 %v474
      %v853 = vpop.f32.mrb[0].mxu0
      %v854 = vadd.f32 0.0, %v853
      %v855 = vpop.f32.mrb[0].mxu0
      %v856 = vadd.f32 0.0, %v855
      %v857 = vpop.f32.mrb[0].mxu0
      %v858 = vadd.f32 0.0, %v857
      %v859 = vpop.f32.mrb[0].mxu0
      %v860 = vadd.f32 0.0, %v859
      %861 = vdwg.mxu0
      %v862 = vpack.c.bf16 %v515, %v511
      %v863 = vpack.c.bf16 %v517, %v513
      %v864 = vpack.c.bf16 %v708, %v704
      %v865 = vpack.c.bf16 %v710, %v706
      %v866 = vpack.c.bf16 %v525, %v521
      %v867 = vpack.c.bf16 %v527, %v523
      %v868 = vpack.c.bf16 %v718, %v714
      %v869 = vpack.c.bf16 %v720, %v716
      %v870 = vpack.c.bf16 %v535, %v531
      %v871 = vpack.c.bf16 %v537, %v533
      %v872 = vpack.c.bf16 %v728, %v724
      %v873 = vpack.c.bf16 %v730, %v726
      %v874 = vpack.c.bf16 %v545, %v541
      %v875 = vpack.c.bf16 %v547, %v543
      %v876 = vpack.c.bf16 %v738, %v734
      %v877 = vpack.c.bf16 %v740, %v736
      %v878 = vpack.c.bf16 %v555, %v551
      %v879 = vpack.c.bf16 %v557, %v553
      %v880 = vpack.c.bf16 %v748, %v744
      %v881 = vpack.c.bf16 %v750, %v746
      %v882 = vpack.c.bf16 %v565, %v561
      %v883 = vpack.c.bf16 %v567, %v563
      %v884 = vpack.c.bf16 %v758, %v754
      %v885 = vpack.c.bf16 %v760, %v756
      %v886 = vpack.c.bf16 %v575, %v571
      %v887 = vpack.c.bf16 %v577, %v573
      %v888 = vpack.c.bf16 %v768, %v764
      %v889 = vpack.c.bf16 %v770, %v766
      %v890 = vpack.c.bf16 %v585, %v581
      %v891 = vpack.c.bf16 %v587, %v583
      %v892 = vpack.c.bf16 %v778, %v774
      %v893 = vpack.c.bf16 %v780, %v776
      %v894 = vpack.c.bf16 %v595, %v591
      %v895 = vpack.c.bf16 %v597, %v593
      %v896 = vpack.c.bf16 %v788, %v784
      %v897 = vpack.c.bf16 %v790, %v786
      %v898 = vpack.c.bf16 %v605, %v601
      %v899 = vpack.c.bf16 %v607, %v603
      %v900 = vpack.c.bf16 %v798, %v794
      %v901 = vpack.c.bf16 %v800, %v796
      %v902 = vpack.c.bf16 %v615, %v611
      %v903 = vpack.c.bf16 %v617, %v613
      %v904 = vpack.c.bf16 %v808, %v804
      %v905 = vpack.c.bf16 %v810, %v806
      %v906 = vpack.c.bf16 %v625, %v621
      %v907 = vpack.c.bf16 %v627, %v623
      %v908 = vpack.c.bf16 %v818, %v814
      %v909 = vpack.c.bf16 %v820, %v816
      %v910 = vpack.c.bf16 %v635, %v631
      %v911 = vpack.c.bf16 %v637, %v633
      %v912 = vpack.c.bf16 %v828, %v824
      %v913 = vpack.c.bf16 %v830, %v826
      %v914 = vpack.c.bf16 %v645, %v641
      %v915 = vpack.c.bf16 %v647, %v643
      %v916 = vpack.c.bf16 %v838, %v834
      %v917 = vpack.c.bf16 %v840, %v836
      %v918 = vpack.c.bf16 %v655, %v651
      %v919 = vpack.c.bf16 %v657, %v653
      %v920 = vpack.c.bf16 %v848, %v844
      %v921 = vpack.c.bf16 %v850, %v846
      %v922 = vpack.c.bf16 %v665, %v661
      %v923 = vpack.c.bf16 %v667, %v663
      %v924 = vpack.c.bf16 %v858, %v854
      %v925 = vpack.c.bf16 %v860, %v856
      %v926 = vmax.bf16 %v862, %v863
      %v927 = vmax.bf16 %v866, %v867
      %v928 = vmax.bf16 %v870, %v871
      %v929 = vmax.bf16 %v874, %v875
      %v930 = vmax.bf16 %v878, %v879
      %v931 = vmax.bf16 %v882, %v883
      %v932 = vmax.bf16 %v886, %v887
      %v933 = vmax.bf16 %v890, %v891
      %v934 = vmax.bf16 %v894, %v895
      %v935 = vmax.bf16 %v898, %v899
      %v936 = vmax.bf16 %v902, %v903
      %v937 = vmax.bf16 %v906, %v907
      %v938 = vmax.bf16 %v910, %v911
      %v939 = vmax.bf16 %v914, %v915
      %v940 = vmax.bf16 %v918, %v919
      %v941 = vmax.bf16 %v922, %v923
      %v942 = vmax.bf16 %v864, %v865
      %v943 = vmax.bf16 %v868, %v869
      %v944 = vmax.bf16 %v872, %v873
      %v945 = vmax.bf16 %v876, %v877
      %v946 = vmax.bf16 %v880, %v881
      %v947 = vmax.bf16 %v884, %v885
      %v948 = vmax.bf16 %v888, %v889
      %v949 = vmax.bf16 %v892, %v893
      %v950 = vmax.bf16 %v896, %v897
      %v951 = vmax.bf16 %v900, %v901
      %v952 = vmax.bf16 %v904, %v905
      %v953 = vmax.bf16 %v908, %v909
      %v954 = vmax.bf16 %v912, %v913
      %v955 = vmax.bf16 %v916, %v917
      %v956 = vmax.bf16 %v920, %v921
      %v957 = vmax.bf16 %v924, %v925
      %v958 = vmax.bf16 %v926, %v942
      %v959 = vmax.bf16 %v927, %v943
      %v960 = vmax.bf16 %v928, %v944
      %v961 = vmax.bf16 %v929, %v945
      %v962 = vmax.bf16 %v930, %v946
      %v963 = vmax.bf16 %v931, %v947
      %v964 = vmax.bf16 %v932, %v948
      %v965 = vmax.bf16 %v933, %v949
      %v966 = vmax.bf16 %v934, %v950
      %v967 = vmax.bf16 %v935, %v951
      %v968 = vmax.bf16 %v936, %v952
      %v969 = vmax.bf16 %v937, %v953
      %v970 = vmax.bf16 %v938, %v954
      %v971 = vmax.bf16 %v939, %v955
      %v972 = vmax.bf16 %v940, %v956
      %v973 = vmax.bf16 %v941, %v957
      %v974 = vld [vmem:[%s2] sm:$0x1]
      %v976 = vpack.i.b16 %v974, %v974
      %v978 = vlaneseq
      %v979 = vshrl.u32 %v978, 7
      %v980 = vsub.s32 0, %v979
      %v981 = vrot.slane %v976, %v980
      %v982 = vadd.bf16 %v958, %v981
      %v983 = vadd.bf16 %v959, %v981
      %v984 = vadd.bf16 %v960, %v981
      %v985 = vadd.bf16 %v961, %v981
      %v986 = vadd.bf16 %v962, %v981
      %v987 = vadd.bf16 %v963, %v981
      %v988 = vadd.bf16 %v964, %v981
      %v989 = vadd.bf16 %v965, %v981
      %v990 = vadd.bf16 %v966, %v981
      %v991 = vadd.bf16 %v967, %v981
      %v992 = vadd.bf16 %v968, %v981
      %v993 = vadd.bf16 %v969, %v981
      %v994 = vadd.bf16 %v970, %v981
      %v995 = vadd.bf16 %v971, %v981
      %v996 = vadd.bf16 %v972, %v981
      %v997 = vadd.bf16 %v973, %v981
      %v998 = vmax.bf16 %v982, 0
      %v999 = vmax.bf16 %v983, 0
      %v1000 = vmax.bf16 %v984, 0
      %v1001 = vmax.bf16 %v985, 0
      %v1002 = vmax.bf16 %v986, 0
      %v1003 = vmax.bf16 %v987, 0
      %v1004 = vmax.bf16 %v988, 0
      %v1005 = vmax.bf16 %v989, 0
      %v1006 = vmax.bf16 %v990, 0
      %v1007 = vmax.bf16 %v991, 0
      %v1008 = vmax.bf16 %v992, 0
      %v1009 = vmax.bf16 %v993, 0
      %v1010 = vmax.bf16 %v994, 0
      %v1011 = vmax.bf16 %v995, 0
      %v1012 = vmax.bf16 %v996, 0
      %v1013 = vmax.bf16 %v997, 0
      %v1014 = vld [vmem:[%s3] sm:$0xf]
      %v1015 = vld [vmem:[%s3 + $0x4] sm:$0xf]
      %v1016 = vld [vmem:[%s3 + $0x8] sm:$0xf]
      %v1017 = vld [vmem:[%s3 + $0xc] sm:$0xf]
      %v1018 = vld [vmem:[%s3 + $0x10] sm:$0xf]
      %v1019 = vld [vmem:[%s3 + $0x14] sm:$0xf]
      %v1020 = vld [vmem:[%s3 + $0x18] sm:$0xf]
      %v1021 = vld [vmem:[%s3 + $0x1c] sm:$0xf]
      %v1022 = vld [vmem:[%s3 + $0x20] sm:$0xf]
      %v1023 = vld [vmem:[%s3 + $0x24] sm:$0xf]
      %v1024 = vld [vmem:[%s3 + $0x28] sm:$0xf]
      %v1025 = vld [vmem:[%s3 + $0x2c] sm:$0xf]
      %v1026 = vld [vmem:[%s3 + $0x30] sm:$0xf]
      %v1027 = vld [vmem:[%s3 + $0x34] sm:$0xf]
      %v1028 = vld [vmem:[%s3 + $0x38] sm:$0xf]
      %v1029 = vld [vmem:[%s3 + $0x3c] sm:$0xf]
      %v1030 = vld [vmem:[%s4] sm:$0x1]
      %v1032 = vlaneseq
      %v1033 = vshrl.u32 %v1032, 7
      %v1034 = vsub.s32 0, %v1033
      %v1035 = vrot.slane %v1030, %v1034
      %v1053 = vunpack.c.l.b16 %v1014
      %v1054 = vunpack.c.l.b16 %v1015
      %v1055 = vunpack.c.l.b16 %v1016
      %v1056 = vunpack.c.l.b16 %v1017
      %v1057 = vunpack.c.l.b16 %v1018
      %v1058 = vunpack.c.l.b16 %v1019
      %v1059 = vunpack.c.l.b16 %v1020
      %v1060 = vunpack.c.l.b16 %v1021
      %v1061 = vunpack.c.l.b16 %v1022
      %v1062 = vunpack.c.l.b16 %v1023
      %v1063 = vunpack.c.l.b16 %v1024
      %v1064 = vunpack.c.l.b16 %v1025
      %v1065 = vunpack.c.l.b16 %v1026
      %v1066 = vunpack.c.l.b16 %v1027
      %v1067 = vunpack.c.l.b16 %v1028
      %v1068 = vunpack.c.l.b16 %v1029
      %v1069 = vpack.c.b16 %v1054, %v1053
      %v1070 = vpack.c.b16 %v1056, %v1055
      %v1071 = vpack.c.b16 %v1058, %v1057
      %v1072 = vpack.c.b16 %v1060, %v1059
      %v1073 = vpack.c.b16 %v1062, %v1061
      %v1074 = vpack.c.b16 %v1064, %v1063
      %v1075 = vpack.c.b16 %v1066, %v1065
      %v1076 = vpack.c.b16 %v1068, %v1067
      %1085 = vmatprep.subr.bf16.mxu0 0
      %1086 = vmatpush1.bf16.msra.mxu0 %v1069
      %1087 = vmatprep.subr.bf16.mxu0 0
      %1088 = vmatpush1.bf16.msra.mxu0 %v1070
      %1089 = vmatprep.subr.bf16.mxu0 0
      %1090 = vmatpush1.bf16.msra.mxu0 %v1071
      %1091 = vmatprep.subr.bf16.mxu0 0
      %1092 = vmatpush1.bf16.msra.mxu0 %v1072
      %1093 = vmatprep.subr.bf16.mxu0 0
      %1094 = vmatpush1.bf16.msra.mxu0 %v1073
      %1095 = vmatprep.subr.bf16.mxu0 0
      %1096 = vmatpush1.bf16.msra.mxu0 %v1074
      %1097 = vmatprep.subr.bf16.mxu0 0
      %1098 = vmatpush1.bf16.msra.mxu0 %v1075
      %1099 = vmatprep.subr.bf16.mxu0 0
      %1100 = vmatpush1.bf16.msra.mxu0 %v1076
      %1101 = vmatprep.subr.bf16.mxu0 0
      %1102 = vmatpush1.bf16.msra.mxu0 0
      %1103 = vmatprep.subr.bf16.mxu0 0
      %1104 = vmatpush1.bf16.msra.mxu0 0
      %1105 = vmatprep.subr.bf16.mxu0 0
      %1106 = vmatpush1.bf16.msra.mxu0 0
      %1107 = vmatprep.subr.bf16.mxu0 0
      %1108 = vmatpush1.bf16.msra.mxu0 0
      %1109 = vmatprep.subr.bf16.mxu0 0
      %1110 = vmatpush1.bf16.msra.mxu0 0
      %1111 = vmatprep.subr.bf16.mxu0 0
      %1112 = vmatpush1.bf16.msra.mxu0 0
      %1113 = vmatprep.subr.bf16.mxu0 0
      %1114 = vmatpush1.bf16.msra.mxu0 0
      %1115 = vmatprep.subr.bf16.mxu0 0
      %1116 = vmatpush1.bf16.msra.mxu0 0
      %1117 = vmatprep.mubr.bf16.mxu0 0
      %1118 = vmatmul.mubr.bf16.gmra.mrb[0].mxu0 %v998
      %v1119 = vpop.f32.mrb[0].mxu0
      %v1120 = vadd.f32 %v1035, %v1119
      %v1121 = vpop.f32.mrb[0].mxu0
      %v1122 = vpop.f32.mrb[0].mxu0
      %v1123 = vadd.f32 %v1035, %v1122
      %v1124 = vpop.f32.mrb[0].mxu0
      %1125 = vmatprep.mubr.bf16.mxu0 0
      %1126 = vmatmul.mubr.bf16.gmra.mrb[0].mxu0 %v999
      %v1127 = vpop.f32.mrb[0].mxu0
      %v1128 = vadd.f32 %v1035, %v1127
      %v1129 = vpop.f32.mrb[0].mxu0
      %v1130 = vpop.f32.mrb[0].mxu0
      %v1131 = vadd.f32 %v1035, %v1130
      %v1132 = vpop.f32.mrb[0].mxu0
      %1133 = vmatprep.mubr.bf16.mxu0 0
      %1134 = vmatmul.mubr.bf16.gmra.mrb[0].mxu0 %v1000
      %v1135 = vpop.f32.mrb[0].mxu0
      %v1136 = vadd.f32 %v1035, %v1135
      %v1137 = vpop.f32.mrb[0].mxu0
      %v1138 = vpop.f32.mrb[0].mxu0
      %v1139 = vadd.f32 %v1035, %v1138
      %v1140 = vpop.f32.mrb[0].mxu0
      %1141 = vmatprep.mubr.bf16.mxu0 0
      %1142 = vmatmul.mubr.bf16.gmra.mrb[0].mxu0 %v1001
      %v1143 = vpop.f32.mrb[0].mxu0
      %v1144 = vadd.f32 %v1035, %v1143
      %v1145 = vpop.f32.mrb[0].mxu0
      %v1146 = vpop.f32.mrb[0].mxu0
      %v1147 = vadd.f32 %v1035, %v1146
      %v1148 = vpop.f32.mrb[0].mxu0
      %1149 = vmatprep.mubr.bf16.mxu0 0
      %1150 = vmatmul.mubr.bf16.gmra.mrb[0].mxu0 %v1002
      %v1151 = vpop.f32.mrb[0].mxu0
      %v1152 = vadd.f32 %v1035, %v1151
      %v1153 = vpop.f32.mrb[0].mxu0
      %v1154 = vpop.f32.mrb[0].mxu0
      %v1155 = vadd.f32 %v1035, %v1154
      %v1156 = vpop.f32.mrb[0].mxu0
      %1157 = vmatprep.mubr.bf16.mxu0 0
      %1158 = vmatmul.mubr.bf16.gmra.mrb[0].mxu0 %v1003
      %v1159 = vpop.f32.mrb[0].mxu0
      %v1160 = vadd.f32 %v1035, %v1159
      %v1161 = vpop.f32.mrb[0].mxu0
      %v1162 = vpop.f32.mrb[0].mxu0
      %v1163 = vadd.f32 %v1035, %v1162
      %v1164 = vpop.f32.mrb[0].mxu0
      %1165 = vmatprep.mubr.bf16.mxu0 0
      %1166 = vmatmul.mubr.bf16.gmra.mrb[0].mxu0 %v1004
      %v1167 = vpop.f32.mrb[0].mxu0
      %v1168 = vadd.f32 %v1035, %v1167
      %v1169 = vpop.f32.mrb[0].mxu0
      %v1170 = vpop.f32.mrb[0].mxu0
      %v1171 = vadd.f32 %v1035, %v1170
      %v1172 = vpop.f32.mrb[0].mxu0
      %1173 = vmatprep.mubr.bf16.mxu0 0
      %1174 = vmatmul.mubr.bf16.gmra.mrb[0].mxu0 %v1005
      %v1175 = vpop.f32.mrb[0].mxu0
      %v1176 = vadd.f32 %v1035, %v1175
      %v1177 = vpop.f32.mrb[0].mxu0
      %v1178 = vpop.f32.mrb[0].mxu0
      %v1179 = vadd.f32 %v1035, %v1178
      %v1180 = vpop.f32.mrb[0].mxu0
      %1181 = vmatprep.mubr.bf16.mxu0 0
      %1182 = vmatmul.mubr.bf16.gmra.mrb[0].mxu0 %v1006
      %v1183 = vpop.f32.mrb[0].mxu0
      %v1184 = vadd.f32 %v1035, %v1183
      %v1185 = vpop.f32.mrb[0].mxu0
      %v1186 = vpop.f32.mrb[0].mxu0
      %v1187 = vadd.f32 %v1035, %v1186
      %v1188 = vpop.f32.mrb[0].mxu0
      %1189 = vmatprep.mubr.bf16.mxu0 0
      %1190 = vmatmul.mubr.bf16.gmra.mrb[0].mxu0 %v1007
      %v1191 = vpop.f32.mrb[0].mxu0
      %v1192 = vadd.f32 %v1035, %v1191
      %v1193 = vpop.f32.mrb[0].mxu0
      %v1194 = vpop.f32.mrb[0].mxu0
      %v1195 = vadd.f32 %v1035, %v1194
      %v1196 = vpop.f32.mrb[0].mxu0
      %1197 = vmatprep.mubr.bf16.mxu0 0
      %1198 = vmatmul.mubr.bf16.gmra.mrb[0].mxu0 %v1008
      %v1199 = vpop.f32.mrb[0].mxu0
      %v1200 = vadd.f32 %v1035, %v1199
      %v1201 = vpop.f32.mrb[0].mxu0
      %v1202 = vpop.f32.mrb[0].mxu0
      %v1203 = vadd.f32 %v1035, %v1202
      %v1204 = vpop.f32.mrb[0].mxu0
      %1205 = vmatprep.mubr.bf16.mxu0 0
      %1206 = vmatmul.mubr.bf16.gmra.mrb[0].mxu0 %v1009
      %v1207 = vpop.f32.mrb[0].mxu0
      %v1208 = vadd.f32 %v1035, %v1207
      %v1209 = vpop.f32.mrb[0].mxu0
      %v1210 = vpop.f32.mrb[0].mxu0
      %v1211 = vadd.f32 %v1035, %v1210
      %v1212 = vpop.f32.mrb[0].mxu0
      %1213 = vmatprep.mubr.bf16.mxu0 0
      %1214 = vmatmul.mubr.bf16.gmra.mrb[0].mxu0 %v1010
      %v1215 = vpop.f32.mrb[0].mxu0
      %v1216 = vadd.f32 %v1035, %v1215
      %v1217 = vpop.f32.mrb[0].mxu0
      %v1218 = vpop.f32.mrb[0].mxu0
      %v1219 = vadd.f32 %v1035, %v1218
      %v1220 = vpop.f32.mrb[0].mxu0
      %1221 = vmatprep.mubr.bf16.mxu0 0
      %1222 = vmatmul.mubr.bf16.gmra.mrb[0].mxu0 %v1011
      %v1223 = vpop.f32.mrb[0].mxu0
      %v1224 = vadd.f32 %v1035, %v1223
      %v1225 = vpop.f32.mrb[0].mxu0
      %v1226 = vpop.f32.mrb[0].mxu0
      %v1227 = vadd.f32 %v1035, %v1226
      %v1228 = vpop.f32.mrb[0].mxu0
      %1229 = vmatprep.mubr.bf16.mxu0 0
      %1230 = vmatmul.mubr.bf16.gmra.mrb[0].mxu0 %v1012
      %v1231 = vpop.f32.mrb[0].mxu0
      %v1232 = vadd.f32 %v1035, %v1231
      %v1233 = vpop.f32.mrb[0].mxu0
      %v1234 = vpop.f32.mrb[0].mxu0
      %v1235 = vadd.f32 %v1035, %v1234
      %v1236 = vpop.f32.mrb[0].mxu0
      %1237 = vmatprep.mubr.bf16.mxu0 0
      %1238 = vmatmul.mubr.bf16.gmra.mrb[0].mxu0 %v1013
      %v1239 = vpop.f32.mrb[0].mxu0
      %v1240 = vadd.f32 %v1035, %v1239
      %v1241 = vpop.f32.mrb[0].mxu0
      %v1242 = vpop.f32.mrb[0].mxu0
      %v1243 = vadd.f32 %v1035, %v1242
      %v1244 = vpop.f32.mrb[0].mxu0
      %1245 = vdwg.mxu0
      %v1246 = vmax.f32 %v1120, 0.0
      %v1247 = vmax.f32 %v1123, 0.0
      %v1248 = vmax.f32 %v1128, 0.0
      %v1249 = vmax.f32 %v1131, 0.0
      %v1250 = vmax.f32 %v1136, 0.0
      %v1251 = vmax.f32 %v1139, 0.0
      %v1252 = vmax.f32 %v1144, 0.0
      %v1253 = vmax.f32 %v1147, 0.0
      %v1254 = vmax.f32 %v1152, 0.0
      %v1255 = vmax.f32 %v1155, 0.0
      %v1256 = vmax.f32 %v1160, 0.0
      %v1257 = vmax.f32 %v1163, 0.0
      %v1258 = vmax.f32 %v1168, 0.0
      %v1259 = vmax.f32 %v1171, 0.0
      %v1260 = vmax.f32 %v1176, 0.0
      %v1261 = vmax.f32 %v1179, 0.0
      %v1262 = vmax.f32 %v1184, 0.0
      %v1263 = vmax.f32 %v1187, 0.0
      %v1264 = vmax.f32 %v1192, 0.0
      %v1265 = vmax.f32 %v1195, 0.0
      %v1266 = vmax.f32 %v1200, 0.0
      %v1267 = vmax.f32 %v1203, 0.0
      %v1268 = vmax.f32 %v1208, 0.0
      %v1269 = vmax.f32 %v1211, 0.0
      %v1270 = vmax.f32 %v1216, 0.0
      %v1271 = vmax.f32 %v1219, 0.0
      %v1272 = vmax.f32 %v1224, 0.0
      %v1273 = vmax.f32 %v1227, 0.0
      %v1274 = vmax.f32 %v1232, 0.0
      %v1275 = vmax.f32 %v1235, 0.0
      %v1276 = vmax.f32 %v1240, 0.0
      %v1277 = vmax.f32 %v1243, 0.0
      %1278 = vrot.lane.b32.xlu0 %v1246, 96
      %v1279 = vpop.permute.xlu0 %1278
      %1280 = vrot.lane.b32.xlu0 %v1247, 96
      %v1281 = vpop.permute.xlu0 %1280
      %1282 = vrot.lane.b32.xlu0 %v1248, 96
      %v1283 = vpop.permute.xlu0 %1282
      %1284 = vrot.lane.b32.xlu0 %v1249, 96
      %v1285 = vpop.permute.xlu0 %1284
      %1286 = vrot.lane.b32.xlu0 %v1250, 96
      %v1287 = vpop.permute.xlu0 %1286
      %1288 = vrot.lane.b32.xlu0 %v1251, 96
      %v1289 = vpop.permute.xlu0 %1288
      %1290 = vrot.lane.b32.xlu0 %v1252, 96
      %v1291 = vpop.permute.xlu0 %1290
      %1292 = vrot.lane.b32.xlu0 %v1253, 96
      %v1293 = vpop.permute.xlu0 %1292
      %1294 = vrot.lane.b32.xlu0 %v1254, 96
      %v1295 = vpop.permute.xlu0 %1294
      %1296 = vrot.lane.b32.xlu0 %v1255, 96
      %v1297 = vpop.permute.xlu0 %1296
      %1298 = vrot.lane.b32.xlu0 %v1256, 96
      %v1299 = vpop.permute.xlu0 %1298
      %1300 = vrot.lane.b32.xlu0 %v1257, 96
      %v1301 = vpop.permute.xlu0 %1300
      %1302 = vrot.lane.b32.xlu0 %v1258, 96
      %v1303 = vpop.permute.xlu0 %1302
      %1304 = vrot.lane.b32.xlu0 %v1259, 96
      %v1305 = vpop.permute.xlu0 %1304
      %1306 = vrot.lane.b32.xlu0 %v1260, 96
      %v1307 = vpop.permute.xlu0 %1306
      %1308 = vrot.lane.b32.xlu0 %v1261, 96
      %v1309 = vpop.permute.xlu0 %1308
      %1310 = vrot.lane.b32.xlu0 %v1262, 96
      %v1311 = vpop.permute.xlu0 %1310
      %1312 = vrot.lane.b32.xlu0 %v1263, 96
      %v1313 = vpop.permute.xlu0 %1312
      %1314 = vrot.lane.b32.xlu0 %v1264, 96
      %v1315 = vpop.permute.xlu0 %1314
      %1316 = vrot.lane.b32.xlu0 %v1265, 96
      %v1317 = vpop.permute.xlu0 %1316
      %1318 = vrot.lane.b32.xlu0 %v1266, 96
      %v1319 = vpop.permute.xlu0 %1318
      %1320 = vrot.lane.b32.xlu0 %v1267, 96
      %v1321 = vpop.permute.xlu0 %1320
      %1322 = vrot.lane.b32.xlu0 %v1268, 96
      %v1323 = vpop.permute.xlu0 %1322
      %1324 = vrot.lane.b32.xlu0 %v1269, 96
      %v1325 = vpop.permute.xlu0 %1324
      %1326 = vrot.lane.b32.xlu0 %v1270, 96
      %v1327 = vpop.permute.xlu0 %1326
      %1328 = vrot.lane.b32.xlu0 %v1271, 96
      %v1329 = vpop.permute.xlu0 %1328
      %1330 = vrot.lane.b32.xlu0 %v1272, 96
      %v1331 = vpop.permute.xlu0 %1330
      %1332 = vrot.lane.b32.xlu0 %v1273, 96
      %v1333 = vpop.permute.xlu0 %1332
      %1334 = vrot.lane.b32.xlu0 %v1274, 96
      %v1335 = vpop.permute.xlu0 %1334
      %1336 = vrot.lane.b32.xlu0 %v1275, 96
      %v1337 = vpop.permute.xlu0 %1336
      %1338 = vrot.lane.b32.xlu0 %v1276, 96
      %v1339 = vpop.permute.xlu0 %1338
      %1340 = vrot.lane.b32.xlu0 %v1277, 96
      %v1341 = vpop.permute.xlu0 %1340
      %v1342 = vmax.f32 %v1246, %v1279
      %v1343 = vmax.f32 %v1247, %v1281
      %v1344 = vmax.f32 %v1248, %v1283
      %v1345 = vmax.f32 %v1249, %v1285
      %v1346 = vmax.f32 %v1250, %v1287
      %v1347 = vmax.f32 %v1251, %v1289
      %v1348 = vmax.f32 %v1252, %v1291
      %v1349 = vmax.f32 %v1253, %v1293
      %v1350 = vmax.f32 %v1254, %v1295
      %v1351 = vmax.f32 %v1255, %v1297
      %v1352 = vmax.f32 %v1256, %v1299
      %v1353 = vmax.f32 %v1257, %v1301
      %v1354 = vmax.f32 %v1258, %v1303
      %v1355 = vmax.f32 %v1259, %v1305
      %v1356 = vmax.f32 %v1260, %v1307
      %v1357 = vmax.f32 %v1261, %v1309
      %v1358 = vmax.f32 %v1262, %v1311
      %v1359 = vmax.f32 %v1263, %v1313
      %v1360 = vmax.f32 %v1264, %v1315
      %v1361 = vmax.f32 %v1265, %v1317
      %v1362 = vmax.f32 %v1266, %v1319
      %v1363 = vmax.f32 %v1267, %v1321
      %v1364 = vmax.f32 %v1268, %v1323
      %v1365 = vmax.f32 %v1269, %v1325
      %v1366 = vmax.f32 %v1270, %v1327
      %v1367 = vmax.f32 %v1271, %v1329
      %v1368 = vmax.f32 %v1272, %v1331
      %v1369 = vmax.f32 %v1273, %v1333
      %v1370 = vmax.f32 %v1274, %v1335
      %v1371 = vmax.f32 %v1275, %v1337
      %v1372 = vmax.f32 %v1276, %v1339
      %v1373 = vmax.f32 %v1277, %v1341
      %1374 = vrot.lane.b32.xlu0 %v1246, 64
      %v1375 = vpop.permute.xlu0 %1374
      %1376 = vrot.lane.b32.xlu0 %v1247, 64
      %v1377 = vpop.permute.xlu0 %1376
      %1378 = vrot.lane.b32.xlu0 %v1248, 64
      %v1379 = vpop.permute.xlu0 %1378
      %1380 = vrot.lane.b32.xlu0 %v1249, 64
      %v1381 = vpop.permute.xlu0 %1380
      %1382 = vrot.lane.b32.xlu0 %v1250, 64
      %v1383 = vpop.permute.xlu0 %1382
      %1384 = vrot.lane.b32.xlu0 %v1251, 64
      %v1385 = vpop.permute.xlu0 %1384
      %1386 = vrot.lane.b32.xlu0 %v1252, 64
      %v1387 = vpop.permute.xlu0 %1386
      %1388 = vrot.lane.b32.xlu0 %v1253, 64
      %v1389 = vpop.permute.xlu0 %1388
      %1390 = vrot.lane.b32.xlu0 %v1254, 64
      %v1391 = vpop.permute.xlu0 %1390
      %1392 = vrot.lane.b32.xlu0 %v1255, 64
      %v1393 = vpop.permute.xlu0 %1392
      %1394 = vrot.lane.b32.xlu0 %v1256, 64
      %v1395 = vpop.permute.xlu0 %1394
      %1396 = vrot.lane.b32.xlu0 %v1257, 64
      %v1397 = vpop.permute.xlu0 %1396
      %1398 = vrot.lane.b32.xlu0 %v1258, 64
      %v1399 = vpop.permute.xlu0 %1398
      %1400 = vrot.lane.b32.xlu0 %v1259, 64
      %v1401 = vpop.permute.xlu0 %1400
      %1402 = vrot.lane.b32.xlu0 %v1260, 64
      %v1403 = vpop.permute.xlu0 %1402
      %1404 = vrot.lane.b32.xlu0 %v1261, 64
      %v1405 = vpop.permute.xlu0 %1404
      %1406 = vrot.lane.b32.xlu0 %v1262, 64
      %v1407 = vpop.permute.xlu0 %1406
      %1408 = vrot.lane.b32.xlu0 %v1263, 64
      %v1409 = vpop.permute.xlu0 %1408
      %1410 = vrot.lane.b32.xlu0 %v1264, 64
      %v1411 = vpop.permute.xlu0 %1410
      %1412 = vrot.lane.b32.xlu0 %v1265, 64
      %v1413 = vpop.permute.xlu0 %1412
      %1414 = vrot.lane.b32.xlu0 %v1266, 64
      %v1415 = vpop.permute.xlu0 %1414
      %1416 = vrot.lane.b32.xlu0 %v1267, 64
      %v1417 = vpop.permute.xlu0 %1416
      %1418 = vrot.lane.b32.xlu0 %v1268, 64
      %v1419 = vpop.permute.xlu0 %1418
      %1420 = vrot.lane.b32.xlu0 %v1269, 64
      %v1421 = vpop.permute.xlu0 %1420
      %1422 = vrot.lane.b32.xlu0 %v1270, 64
      %v1423 = vpop.permute.xlu0 %1422
      %1424 = vrot.lane.b32.xlu0 %v1271, 64
      %v1425 = vpop.permute.xlu0 %1424
      %1426 = vrot.lane.b32.xlu0 %v1272, 64
      %v1427 = vpop.permute.xlu0 %1426
      %1428 = vrot.lane.b32.xlu0 %v1273, 64
      %v1429 = vpop.permute.xlu0 %1428
      %1430 = vrot.lane.b32.xlu0 %v1274, 64
      %v1431 = vpop.permute.xlu0 %1430
      %1432 = vrot.lane.b32.xlu0 %v1275, 64
      %v1433 = vpop.permute.xlu0 %1432
      %1434 = vrot.lane.b32.xlu0 %v1276, 64
      %v1435 = vpop.permute.xlu0 %1434
      %1436 = vrot.lane.b32.xlu0 %v1277, 64
      %v1437 = vpop.permute.xlu0 %1436
      %v1438 = vmax.f32 %v1342, %v1375
      %v1439 = vmax.f32 %v1343, %v1377
      %v1440 = vmax.f32 %v1344, %v1379
      %v1441 = vmax.f32 %v1345, %v1381
      %v1442 = vmax.f32 %v1346, %v1383
      %v1443 = vmax.f32 %v1347, %v1385
      %v1444 = vmax.f32 %v1348, %v1387
      %v1445 = vmax.f32 %v1349, %v1389
      %v1446 = vmax.f32 %v1350, %v1391
      %v1447 = vmax.f32 %v1351, %v1393
      %v1448 = vmax.f32 %v1352, %v1395
      %v1449 = vmax.f32 %v1353, %v1397
      %v1450 = vmax.f32 %v1354, %v1399
      %v1451 = vmax.f32 %v1355, %v1401
      %v1452 = vmax.f32 %v1356, %v1403
      %v1453 = vmax.f32 %v1357, %v1405
      %v1454 = vmax.f32 %v1358, %v1407
      %v1455 = vmax.f32 %v1359, %v1409
      %v1456 = vmax.f32 %v1360, %v1411
      %v1457 = vmax.f32 %v1361, %v1413
      %v1458 = vmax.f32 %v1362, %v1415
      %v1459 = vmax.f32 %v1363, %v1417
      %v1460 = vmax.f32 %v1364, %v1419
      %v1461 = vmax.f32 %v1365, %v1421
      %v1462 = vmax.f32 %v1366, %v1423
      %v1463 = vmax.f32 %v1367, %v1425
      %v1464 = vmax.f32 %v1368, %v1427
      %v1465 = vmax.f32 %v1369, %v1429
      %v1466 = vmax.f32 %v1370, %v1431
      %v1467 = vmax.f32 %v1371, %v1433
      %v1468 = vmax.f32 %v1372, %v1435
      %v1469 = vmax.f32 %v1373, %v1437
      %v1470 = vld [vmem:[%s5] sm:$0x3]
      %v1471 = vlaneseq
      %v1472 = vshrl.u32 %v1471, 7
      %v1473 = vsub.s32 0, %v1472
      %v1474 = vrot.slane %v1470, %v1473
      %v1475 = vmul.f32 %v1438, %v1474
      %v1476 = vmul.f32 %v1439, %v1474
      %v1477 = vmul.f32 %v1440, %v1474
      %v1478 = vmul.f32 %v1441, %v1474
      %v1479 = vmul.f32 %v1442, %v1474
      %v1480 = vmul.f32 %v1443, %v1474
      %v1481 = vmul.f32 %v1444, %v1474
      %v1482 = vmul.f32 %v1445, %v1474
      %v1483 = vmul.f32 %v1446, %v1474
      %v1484 = vmul.f32 %v1447, %v1474
      %v1485 = vmul.f32 %v1448, %v1474
      %v1486 = vmul.f32 %v1449, %v1474
      %v1487 = vmul.f32 %v1450, %v1474
      %v1488 = vmul.f32 %v1451, %v1474
      %v1489 = vmul.f32 %v1452, %v1474
      %v1490 = vmul.f32 %v1453, %v1474
      %v1491 = vmul.f32 %v1454, %v1474
      %v1492 = vmul.f32 %v1455, %v1474
      %v1493 = vmul.f32 %v1456, %v1474
      %v1494 = vmul.f32 %v1457, %v1474
      %v1495 = vmul.f32 %v1458, %v1474
      %v1496 = vmul.f32 %v1459, %v1474
      %v1497 = vmul.f32 %v1460, %v1474
      %v1498 = vmul.f32 %v1461, %v1474
      %v1499 = vmul.f32 %v1462, %v1474
      %v1500 = vmul.f32 %v1463, %v1474
      %v1501 = vmul.f32 %v1464, %v1474
      %v1502 = vmul.f32 %v1465, %v1474
      %v1503 = vmul.f32 %v1466, %v1474
      %v1504 = vmul.f32 %v1467, %v1474
      %v1505 = vmul.f32 %v1468, %v1474
      %v1506 = vmul.f32 %v1469, %v1474
      %1507 = vadd.xlane.f32.xlu0 %v1475
      %v1508 = vpop.xlane.xlu0 %1507
      %1509 = vadd.xlane.f32.xlu0 %v1476
      %v1510 = vpop.xlane.xlu0 %1509
      %1511 = vadd.xlane.f32.xlu0 %v1477
      %v1512 = vpop.xlane.xlu0 %1511
      %1513 = vadd.xlane.f32.xlu0 %v1478
      %v1514 = vpop.xlane.xlu0 %1513
      %1515 = vadd.xlane.f32.xlu0 %v1479
      %v1516 = vpop.xlane.xlu0 %1515
      %1517 = vadd.xlane.f32.xlu0 %v1480
      %v1518 = vpop.xlane.xlu0 %1517
      %1519 = vadd.xlane.f32.xlu0 %v1481
      %v1520 = vpop.xlane.xlu0 %1519
      %1521 = vadd.xlane.f32.xlu0 %v1482
      %v1522 = vpop.xlane.xlu0 %1521
      %1523 = vadd.xlane.f32.xlu0 %v1483
      %v1524 = vpop.xlane.xlu0 %1523
      %1525 = vadd.xlane.f32.xlu0 %v1484
      %v1526 = vpop.xlane.xlu0 %1525
      %1527 = vadd.xlane.f32.xlu0 %v1485
      %v1528 = vpop.xlane.xlu0 %1527
      %1529 = vadd.xlane.f32.xlu0 %v1486
      %v1530 = vpop.xlane.xlu0 %1529
      %1531 = vadd.xlane.f32.xlu0 %v1487
      %v1532 = vpop.xlane.xlu0 %1531
      %1533 = vadd.xlane.f32.xlu0 %v1488
      %v1534 = vpop.xlane.xlu0 %1533
      %1535 = vadd.xlane.f32.xlu0 %v1489
      %v1536 = vpop.xlane.xlu0 %1535
      %1537 = vadd.xlane.f32.xlu0 %v1490
      %v1538 = vpop.xlane.xlu0 %1537
      %1539 = vadd.xlane.f32.xlu0 %v1491
      %v1540 = vpop.xlane.xlu0 %1539
      %1541 = vadd.xlane.f32.xlu0 %v1492
      %v1542 = vpop.xlane.xlu0 %1541
      %1543 = vadd.xlane.f32.xlu0 %v1493
      %v1544 = vpop.xlane.xlu0 %1543
      %1545 = vadd.xlane.f32.xlu0 %v1494
      %v1546 = vpop.xlane.xlu0 %1545
      %1547 = vadd.xlane.f32.xlu0 %v1495
      %v1548 = vpop.xlane.xlu0 %1547
      %1549 = vadd.xlane.f32.xlu0 %v1496
      %v1550 = vpop.xlane.xlu0 %1549
      %1551 = vadd.xlane.f32.xlu0 %v1497
      %v1552 = vpop.xlane.xlu0 %1551
      %1553 = vadd.xlane.f32.xlu0 %v1498
      %v1554 = vpop.xlane.xlu0 %1553
      %1555 = vadd.xlane.f32.xlu0 %v1499
      %v1556 = vpop.xlane.xlu0 %1555
      %1557 = vadd.xlane.f32.xlu0 %v1500
      %v1558 = vpop.xlane.xlu0 %1557
      %1559 = vadd.xlane.f32.xlu0 %v1501
      %v1560 = vpop.xlane.xlu0 %1559
      %1561 = vadd.xlane.f32.xlu0 %v1502
      %v1562 = vpop.xlane.xlu0 %1561
      %1563 = vadd.xlane.f32.xlu0 %v1503
      %v1564 = vpop.xlane.xlu0 %1563
      %1565 = vadd.xlane.f32.xlu0 %v1504
      %v1566 = vpop.xlane.xlu0 %1565
      %1567 = vadd.xlane.f32.xlu0 %v1505
      %v1568 = vpop.xlane.xlu0 %1567
      %1569 = vadd.xlane.f32.xlu0 %v1506
      %v1570 = vpop.xlane.xlu0 %1569
      %v1571 = vlaneseq
      %v1572 = vshrl.u32 %v1571, 7
      %v1573 = vsub.s32 1, %v1572
      %v1574 = vrot.slane %v1470, %v1573
      %v1575 = vmul.f32 %v1438, %v1574
      %v1576 = vmul.f32 %v1439, %v1574
      %v1577 = vmul.f32 %v1440, %v1574
      %v1578 = vmul.f32 %v1441, %v1574
      %v1579 = vmul.f32 %v1442, %v1574
      %v1580 = vmul.f32 %v1443, %v1574
      %v1581 = vmul.f32 %v1444, %v1574
      %v1582 = vmul.f32 %v1445, %v1574
      %v1583 = vmul.f32 %v1446, %v1574
      %v1584 = vmul.f32 %v1447, %v1574
      %v1585 = vmul.f32 %v1448, %v1574
      %v1586 = vmul.f32 %v1449, %v1574
      %v1587 = vmul.f32 %v1450, %v1574
      %v1588 = vmul.f32 %v1451, %v1574
      %v1589 = vmul.f32 %v1452, %v1574
      %v1590 = vmul.f32 %v1453, %v1574
      %v1591 = vmul.f32 %v1454, %v1574
      %v1592 = vmul.f32 %v1455, %v1574
      %v1593 = vmul.f32 %v1456, %v1574
      %v1594 = vmul.f32 %v1457, %v1574
      %v1595 = vmul.f32 %v1458, %v1574
      %v1596 = vmul.f32 %v1459, %v1574
      %v1597 = vmul.f32 %v1460, %v1574
      %v1598 = vmul.f32 %v1461, %v1574
      %v1599 = vmul.f32 %v1462, %v1574
      %v1600 = vmul.f32 %v1463, %v1574
      %v1601 = vmul.f32 %v1464, %v1574
      %v1602 = vmul.f32 %v1465, %v1574
      %v1603 = vmul.f32 %v1466, %v1574
      %v1604 = vmul.f32 %v1467, %v1574
      %v1605 = vmul.f32 %v1468, %v1574
      %v1606 = vmul.f32 %v1469, %v1574
      %1607 = vadd.xlane.f32.xlu0 %v1575
      %v1608 = vpop.xlane.xlu0 %1607
      %1609 = vadd.xlane.f32.xlu0 %v1576
      %v1610 = vpop.xlane.xlu0 %1609
      %1611 = vadd.xlane.f32.xlu0 %v1577
      %v1612 = vpop.xlane.xlu0 %1611
      %1613 = vadd.xlane.f32.xlu0 %v1578
      %v1614 = vpop.xlane.xlu0 %1613
      %1615 = vadd.xlane.f32.xlu0 %v1579
      %v1616 = vpop.xlane.xlu0 %1615
      %1617 = vadd.xlane.f32.xlu0 %v1580
      %v1618 = vpop.xlane.xlu0 %1617
      %1619 = vadd.xlane.f32.xlu0 %v1581
      %v1620 = vpop.xlane.xlu0 %1619
      %1621 = vadd.xlane.f32.xlu0 %v1582
      %v1622 = vpop.xlane.xlu0 %1621
      %1623 = vadd.xlane.f32.xlu0 %v1583
      %v1624 = vpop.xlane.xlu0 %1623
      %1625 = vadd.xlane.f32.xlu0 %v1584
      %v1626 = vpop.xlane.xlu0 %1625
      %1627 = vadd.xlane.f32.xlu0 %v1585
      %v1628 = vpop.xlane.xlu0 %1627
      %1629 = vadd.xlane.f32.xlu0 %v1586
      %v1630 = vpop.xlane.xlu0 %1629
      %1631 = vadd.xlane.f32.xlu0 %v1587
      %v1632 = vpop.xlane.xlu0 %1631
      %1633 = vadd.xlane.f32.xlu0 %v1588
      %v1634 = vpop.xlane.xlu0 %1633
      %1635 = vadd.xlane.f32.xlu0 %v1589
      %v1636 = vpop.xlane.xlu0 %1635
      %1637 = vadd.xlane.f32.xlu0 %v1590
      %v1638 = vpop.xlane.xlu0 %1637
      %1639 = vadd.xlane.f32.xlu0 %v1591
      %v1640 = vpop.xlane.xlu0 %1639
      %1641 = vadd.xlane.f32.xlu0 %v1592
      %v1642 = vpop.xlane.xlu0 %1641
      %1643 = vadd.xlane.f32.xlu0 %v1593
      %v1644 = vpop.xlane.xlu0 %1643
      %1645 = vadd.xlane.f32.xlu0 %v1594
      %v1646 = vpop.xlane.xlu0 %1645
      %1647 = vadd.xlane.f32.xlu0 %v1595
      %v1648 = vpop.xlane.xlu0 %1647
      %1649 = vadd.xlane.f32.xlu0 %v1596
      %v1650 = vpop.xlane.xlu0 %1649
      %1651 = vadd.xlane.f32.xlu0 %v1597
      %v1652 = vpop.xlane.xlu0 %1651
      %1653 = vadd.xlane.f32.xlu0 %v1598
      %v1654 = vpop.xlane.xlu0 %1653
      %1655 = vadd.xlane.f32.xlu0 %v1599
      %v1656 = vpop.xlane.xlu0 %1655
      %1657 = vadd.xlane.f32.xlu0 %v1600
      %v1658 = vpop.xlane.xlu0 %1657
      %1659 = vadd.xlane.f32.xlu0 %v1601
      %v1660 = vpop.xlane.xlu0 %1659
      %1661 = vadd.xlane.f32.xlu0 %v1602
      %v1662 = vpop.xlane.xlu0 %1661
      %1663 = vadd.xlane.f32.xlu0 %v1603
      %v1664 = vpop.xlane.xlu0 %1663
      %1665 = vadd.xlane.f32.xlu0 %v1604
      %v1666 = vpop.xlane.xlu0 %1665
      %1667 = vadd.xlane.f32.xlu0 %v1605
      %v1668 = vpop.xlane.xlu0 %1667
      %1669 = vadd.xlane.f32.xlu0 %v1606
      %v1670 = vpop.xlane.xlu0 %1669
      %vm1671 = vcmask 7168
      %v1672 = vsel %vm1671, %v1508, %v1608
      %v1673 = vsel %vm1671, %v1510, %v1610
      %v1674 = vsel %vm1671, %v1512, %v1612
      %v1675 = vsel %vm1671, %v1514, %v1614
      %v1676 = vsel %vm1671, %v1516, %v1616
      %v1677 = vsel %vm1671, %v1518, %v1618
      %v1678 = vsel %vm1671, %v1520, %v1620
      %v1679 = vsel %vm1671, %v1522, %v1622
      %v1680 = vsel %vm1671, %v1524, %v1624
      %v1681 = vsel %vm1671, %v1526, %v1626
      %v1682 = vsel %vm1671, %v1528, %v1628
      %v1683 = vsel %vm1671, %v1530, %v1630
      %v1684 = vsel %vm1671, %v1532, %v1632
      %v1685 = vsel %vm1671, %v1534, %v1634
      %v1686 = vsel %vm1671, %v1536, %v1636
      %v1687 = vsel %vm1671, %v1538, %v1638
      %v1688 = vsel %vm1671, %v1540, %v1640
      %v1689 = vsel %vm1671, %v1542, %v1642
      %v1690 = vsel %vm1671, %v1544, %v1644
      %v1691 = vsel %vm1671, %v1546, %v1646
      %v1692 = vsel %vm1671, %v1548, %v1648
      %v1693 = vsel %vm1671, %v1550, %v1650
      %v1694 = vsel %vm1671, %v1552, %v1652
      %v1695 = vsel %vm1671, %v1554, %v1654
      %v1696 = vsel %vm1671, %v1556, %v1656
      %v1697 = vsel %vm1671, %v1558, %v1658
      %v1698 = vsel %vm1671, %v1560, %v1660
      %v1699 = vsel %vm1671, %v1562, %v1662
      %v1700 = vsel %vm1671, %v1564, %v1664
      %v1701 = vsel %vm1671, %v1566, %v1666
      %v1702 = vsel %vm1671, %v1568, %v1668
      %v1703 = vsel %vm1671, %v1570, %v1670
      %v1704 = vld [vmem:[%s6] sm:$0x1]
      %v1706 = vlaneseq
      %v1707 = vshrl.u32 %v1706, 7
      %v1708 = vsub.s32 0, %v1707
      %v1709 = vrot.slane %v1704, %v1708
      %v1711 = vadd.f32 %v1672, %v1709
      %v1712 = vadd.f32 %v1673, %v1709
      %v1713 = vadd.f32 %v1674, %v1709
      %v1714 = vadd.f32 %v1675, %v1709
      %v1715 = vadd.f32 %v1676, %v1709
      %v1716 = vadd.f32 %v1677, %v1709
      %v1717 = vadd.f32 %v1678, %v1709
      %v1718 = vadd.f32 %v1679, %v1709
      %v1719 = vadd.f32 %v1680, %v1709
      %v1720 = vadd.f32 %v1681, %v1709
      %v1721 = vadd.f32 %v1682, %v1709
      %v1722 = vadd.f32 %v1683, %v1709
      %v1723 = vadd.f32 %v1684, %v1709
      %v1724 = vadd.f32 %v1685, %v1709
      %v1725 = vadd.f32 %v1686, %v1709
      %v1726 = vadd.f32 %v1687, %v1709
      %v1727 = vadd.f32 %v1688, %v1709
      %v1728 = vadd.f32 %v1689, %v1709
      %v1729 = vadd.f32 %v1690, %v1709
      %v1730 = vadd.f32 %v1691, %v1709
      %v1731 = vadd.f32 %v1692, %v1709
      %v1732 = vadd.f32 %v1693, %v1709
      %v1733 = vadd.f32 %v1694, %v1709
      %v1734 = vadd.f32 %v1695, %v1709
      %v1735 = vadd.f32 %v1696, %v1709
      %v1736 = vadd.f32 %v1697, %v1709
      %v1737 = vadd.f32 %v1698, %v1709
      %v1738 = vadd.f32 %v1699, %v1709
      %v1739 = vadd.f32 %v1700, %v1709
      %v1740 = vadd.f32 %v1701, %v1709
      %v1741 = vadd.f32 %v1702, %v1709
      %v1742 = vadd.f32 %v1703, %v1709
      %vm1743 = vcmask 15360
      %1744 = vst.msk [vmem:[%s280] sm:$0xff] %vm1743, %v1711
      %1745 = vst.msk [vmem:[%s280 + $0x8] sm:$0xff] %vm1743, %v1712
      %1746 = vst.msk [vmem:[%s280 + $0x10] sm:$0xff] %vm1743, %v1713
      %1747 = vst.msk [vmem:[%s280 + $0x18] sm:$0xff] %vm1743, %v1714
      %1748 = vst.msk [vmem:[%s280 + $0x20] sm:$0xff] %vm1743, %v1715
      %1749 = vst.msk [vmem:[%s280 + $0x28] sm:$0xff] %vm1743, %v1716
      %1750 = vst.msk [vmem:[%s280 + $0x30] sm:$0xff] %vm1743, %v1717
      %1751 = vst.msk [vmem:[%s280 + $0x38] sm:$0xff] %vm1743, %v1718
      %1752 = vst.msk [vmem:[%s280 + $0x40] sm:$0xff] %vm1743, %v1719
      %1753 = vst.msk [vmem:[%s280 + $0x48] sm:$0xff] %vm1743, %v1720
      %1754 = vst.msk [vmem:[%s280 + $0x50] sm:$0xff] %vm1743, %v1721
      %1755 = vst.msk [vmem:[%s280 + $0x58] sm:$0xff] %vm1743, %v1722
      %1756 = vst.msk [vmem:[%s280 + $0x60] sm:$0xff] %vm1743, %v1723
      %1757 = vst.msk [vmem:[%s280 + $0x68] sm:$0xff] %vm1743, %v1724
      %1758 = vst.msk [vmem:[%s280 + $0x70] sm:$0xff] %vm1743, %v1725
      %1759 = vst.msk [vmem:[%s280 + $0x78] sm:$0xff] %vm1743, %v1726
      %1760 = vst.msk [vmem:[%s280 + $0x80] sm:$0xff] %vm1743, %v1727
      %1761 = vst.msk [vmem:[%s280 + $0x88] sm:$0xff] %vm1743, %v1728
      %1762 = vst.msk [vmem:[%s280 + $0x90] sm:$0xff] %vm1743, %v1729
      %1763 = vst.msk [vmem:[%s280 + $0x98] sm:$0xff] %vm1743, %v1730
      %1764 = vst.msk [vmem:[%s280 + $0xa0] sm:$0xff] %vm1743, %v1731
      %1765 = vst.msk [vmem:[%s280 + $0xa8] sm:$0xff] %vm1743, %v1732
      %1766 = vst.msk [vmem:[%s280 + $0xb0] sm:$0xff] %vm1743, %v1733
      %1767 = vst.msk [vmem:[%s280 + $0xb8] sm:$0xff] %vm1743, %v1734
      %1768 = vst.msk [vmem:[%s280 + $0xc0] sm:$0xff] %vm1743, %v1735
      %1769 = vst.msk [vmem:[%s280 + $0xc8] sm:$0xff] %vm1743, %v1736
      %1770 = vst.msk [vmem:[%s280 + $0xd0] sm:$0xff] %vm1743, %v1737
      %1771 = vst.msk [vmem:[%s280 + $0xd8] sm:$0xff] %vm1743, %v1738
      %1772 = vst.msk [vmem:[%s280 + $0xe0] sm:$0xff] %vm1743, %v1739
      %1773 = vst.msk [vmem:[%s280 + $0xe8] sm:$0xff] %vm1743, %v1740
      %1774 = vst.msk [vmem:[%s280 + $0xf0] sm:$0xff] %vm1743, %v1741
      %1775 = vst.msk [vmem:[%s280 + $0xf8] sm:$0xff] %vm1743, %v1742
      %s1776 = smul.u32 32, %s18
      %p1777 = scmp.lt.s32.totalorder %s1776, 63
      %s1778 = scalar_select %p1777, %s1776, 63
      %s1779 = smul.addr %s1778, 8
      %s1780 = scalar_lea.vmem %s7, %s1779
      // Predicated region
      $region49: #{tpu_custom_call.1} parent=47 // pred_check
        %p1781 = pneg %p188
      $region50: #{tpu_custom_call.1} parent=47 // pred_check_branch
        %1783 = sbr.rel (%p1781) target = $region52
      $region51: #{tpu_custom_call.1} parent=47 // pred_region
        %s1784 = smul.u32 32, %s18
      $region52: #{tpu_custom_call.1} parent=47 // pred_fallthru
        _
    $region48: #{tpu_custom_call.1} parent=5 // pred_fallthru
      _
    %p1785 = scmp.le.s32.totalorder 2, %s13
    // Predicated region
    $region53: #{tpu_custom_call.1} parent=5 // pred_check
      %p1786 = pneg %p1785
    $region54: #{tpu_custom_call.1} parent=5 // pred_check_branch
      %1788 = sbr.rel (%p1786) target = $region56
    $region55: #{tpu_custom_call.1} parent=5 // pred_region
      %s1789 = ssub.s32 %s13, 2
      // Predicated region
      $region57: #{tpu_custom_call.1} parent=55 // pred_check
        %p1790 = pneg %p194
      $region58: #{tpu_custom_call.1} parent=55 // pred_check_branch
        %1792 = sbr.rel (%p1790) target = $region60
      $region59: #{tpu_custom_call.1} parent=55 // pred_region
        %s1793 = smul.u32 32, %s19
        %p1794 = scmp.lt.s32.totalorder %s1793, 63
        %s1795 = scalar_select %p1794, %s1793, 63
        %s1796 = smul.addr %s1795, 8
        %s1797 = scalar_lea.vmem %s7, %s1796
      $region60: #{tpu_custom_call.1} parent=55 // pred_fallthru
        _
    $region56: #{tpu_custom_call.1} parent=5 // pred_fallthru
      _
  $region6: #{tpu_custom_call.1} parent=0 // loop_footer
    %s17 = sadd.s32 1, %s13
  $region7: #{tpu_custom_call.1} parent=0 // loop_footer_branch
    %12 = sbr.rel target = $region3
  $region8: #{tpu_custom_call.1} parent=0 // loop_exit
    _

</llo_original>
